<compile_context>
chip_gen: v7x
topology: tpu7x:2x2x1
jax: 0.10.0
libtpu: 0.0.40
codegen_flags: <defaults>
</compile_context>

<pallas_src>
import jax
import jax.numpy as jnp
from jax import lax
from jax.experimental import pallas as pl
from jax.experimental.pallas import tpu as pltpu


def _silu(y):
    # y * sigmoid(y): exp and the approximate reciprocal both run on the EUP.
    return y * pl.reciprocal(1.0 + jnp.exp(-y), approx=True)


def _gn_silu(h, gamma, beta, groups, inv_cnt, eps):
    """One-pass GroupNorm (cg == 8) over (C, P) for one sample, then SiLU.

    Pad lanes (if any) must be zero in h; inv_cnt = 1 / (8 * HW_valid).
    """
    C, P = h.shape
    hg = h.reshape(groups, 8, P)                           # free sublane split
    s1 = jnp.sum(jnp.sum(hg, axis=2, keepdims=True), axis=1, keepdims=True)
    s2 = jnp.sum(jnp.sum(hg * hg, axis=2, keepdims=True), axis=1, keepdims=True)
    mean = s1 * inv_cnt                                    # (G, 1, 1)
    var = jnp.maximum(s2 * inv_cnt - mean * mean, 0.0)     # guard tiny negatives
    rstd = lax.rsqrt(var + eps)                            # (G, 1, 1)
    g3 = gamma.reshape(groups, 8, 1)
    b3 = beta.reshape(groups, 8, 1)
    a = (rstd * g3).reshape(C, 1)                          # per-channel scale
    b = (b3 - (mean * rstd) * g3).reshape(C, 1)            # per-channel bias
    return _silu(h * a + b)


def _convnext_body(xin_ref, dwk_ref, cm_ref, g1_ref, b1_ref, w1_ref, g2_ref,
                   b2_ref, w2_ref, wsc_ref, bias_ref, out_ref,
                   xpad_ref, hcat_ref, h2cat_ref, xcat_ref, *,
                   Nb, W, HW, HWp, KH, KW, pad, data_start, G1, G2,
                   inv1, inv2, eps, identity):
    f32 = jnp.float32

    # Zero the padded-input scratch once per grid step; the per-sample copies
    # below only overwrite the (aligned) data window, so the halo stays zero.
    xpad_ref[...] = jnp.zeros_like(xpad_ref)

    # ---- per-sample: depthwise conv + GN1 + SiLU, packed along lanes -------
    for n in range(Nb):                                    # static, Nb <= 8
        xn = xin_ref[n].astype(f32)                        # (Cin, HW)
        xpad_ref[:, data_start:data_start + HW] = xn       # aligned lane store
        xcat_ref[:, n * HWp:n * HWp + HW] = xn.astype(xcat_ref.dtype)

        acc = None
        for dw in range(KW):
            s = None
            for dh in range(KH):
                t = dh * KW + dw
                o = data_start - (pad * W + pad) + dh * W + dw
                term = xpad_ref[:, o:o + HWp] * dwk_ref[:, t:t + 1].astype(f32)
                s = term if s is None else s + term
            contrib = s * cm_ref[dw:dw + 1, :]             # (1, HWp) column mask
            acc = contrib if acc is None else acc + contrib

        h = _gn_silu(acc, g1_ref[...].astype(f32), b1_ref[...].astype(f32),
                     G1, inv1, eps)
        if HWp != HW:
            # center column mask == lane-validity mask; keeps GN2 stats clean.
            h = h * cm_ref[pad:pad + 1, :]
        hcat_ref[:, n * HWp:(n + 1) * HWp] = h.astype(hcat_ref.dtype)

    # ---- batched 1x1 expand (one MXU dot for the whole block) --------------
    z = jnp.dot(w1_ref[...], hcat_ref[...], preferred_element_type=f32)

    # ---- per-sample GN2 + SiLU ---------------------------------------------
    for n in range(Nb):
        h2 = _gn_silu(z[:, n * HWp:(n + 1) * HWp],
                      g2_ref[...].astype(f32), b2_ref[...].astype(f32),
                      G2, inv2, eps)
        h2cat_ref[:, n * HWp:(n + 1) * HWp] = h2.astype(h2cat_ref.dtype)

    # ---- batched project + shortcut + bias ----------------------------------
    y = jnp.dot(w2_ref[...], h2cat_ref[...], preferred_element_type=f32)
    if identity:
        y = y + xcat_ref[...]                              # plain f32 residual add
    else:
        y = y + jnp.dot(wsc_ref[...], xcat_ref[...], preferred_element_type=f32)
    y = y + bias_ref[...].astype(f32)

    for n in range(Nb):
        out_ref[n] = y[:, n * HWp:(n + 1) * HWp].astype(out_ref.dtype)


def _pick_batch_block(N, per_sample_bytes, budget_bytes):
    nb = max(1, min(N, 8, budget_bytes // max(per_sample_bytes, 1)))
    if N >= 4:
        nb = min(nb, max(1, N // 4))   # >= 4 steps total: >= 2 per TC on v7x
    elif N >= 2:
        nb = min(nb, 1)                # keep 2 steps so both v7x TCs get work
    while N % nb:
        nb -= 1
    return nb


def convnext_forward(x_nchw, params, *, kernel_size, stride, padding):
    """Fused ConvNext block. Input/output are NCHW (PyTorch convention)."""
    if isinstance(kernel_size, int):
        kernel_size = (kernel_size, kernel_size)
    KH, KW = kernel_size
    N, Cin, H, W = x_nchw.shape
    Cexp = params["pw1_w"].shape[0]
    Cout = params["pw2_w"].shape[0]
    # TODO(synk): stride > 1 is not supported (the module's residual add would
    # be shape-invalid anyway); only stride=1 "same"-style padding is handled.
    assert stride == 1, "stride must be 1 for the residual add to be shape-valid"
    assert H + 2 * padding - KH + 1 == H and W + 2 * padding - KW + 1 == W, \
        "padding must preserve spatial dims (e.g. k=3, pad=1)"
    assert Cin % 8 == 0 and Cexp % 8 == 0, "GroupNorm(C//8, C) needs C % 8 == 0"

    HW = H * W
    HWp = ((HW + 127) // 128) * 128          # lane-dense spatial length
    pad = padding
    eps = 1e-5
    G1, G2 = Cin // 8, Cexp // 8
    identity = (Cin == Cout)

    # In-kernel padded-input scratch layout: the sample is placed at a
    # 128-aligned offset data_start >= pad*W + pad, the rest is zero.
    center_off = pad * W + pad
    data_start = ((center_off + 127) // 128) * 128
    o_max = (KH - 1) * W + (KW - 1)
    L = max(data_start + HW, HWp + o_max + (data_start - center_off))
    L = ((L + 127) // 128) * 128

    # ---- kernel-side operands ------------------------------------------------
    x_flat = x_nchw.reshape(N, Cin, HW).astype(jnp.float32)       # free reshape
    dwk = params["dw_w"].reshape(Cin, KH * KW).astype(jnp.float32)

    q = jnp.arange(HWp, dtype=jnp.int32)
    wpos = q % W
    lane_ok = q < HW
    cmask = jnp.stack(
        [((wpos + dw - pad >= 0) & (wpos + dw - pad < W) & lane_ok)
         .astype(jnp.float32) for dw in range(KW)], axis=0)        # (KW, HWp)

    g1 = params["gn1_g"].reshape(Cin, 1).astype(jnp.float32)
    b1 = params["gn1_b"].reshape(Cin, 1).astype(jnp.float32)
    w1b = params["pw1_w"].reshape(Cexp, Cin).astype(jnp.bfloat16)
    g2 = params["gn2_g"].reshape(Cexp, 1).astype(jnp.float32)
    b2 = params["gn2_b"].reshape(Cexp, 1).astype(jnp.float32)
    w2b = params["pw2_w"].reshape(Cout, Cexp).astype(jnp.bfloat16)
    if identity:
        wscb = None
        bias = params["pw2_b"].reshape(Cout, 1).astype(jnp.float32)
    else:
        wscb = params["sc_w"].reshape(Cout, Cin).astype(jnp.bfloat16)
        bias = (params["pw2_b"] + params["sc_b"]).reshape(Cout, 1).astype(jnp.float32)

    # ---- generation-aware VMEM budget & batch-block sizing -------------------
    try:
        phys_vmem = int(getattr(pltpu.get_tpu_info(), "vmem_capacity_bytes",
                                64 * 2**20))
    except Exception:
        phys_vmem = 64 * 2**20
    xcat_bytes = 4 if identity else 2
    per_sample = (2 * Cin * HW * 4                 # input block (double-buffered)
                  + 2 * Cout * HWp * 4             # output block (double-buffered)
                  + HWp * (Cin * 2 + Cexp * 2 + Cin * xcat_bytes)   # hcat/h2cat/xcat
                  + HWp * (Cexp + Cout) * 4)       # z / y temporaries
    fixed = (Cin * L * 4
             + 4 * (Cin * KH * KW + KW * HWp + 2 * Cin + 2 * Cexp + Cout)
             + 2 * (Cexp * Cin + Cout * Cexp + (0 if identity else Cout * Cin)))
    budget = max(per_sample, int(0.40 * phys_vmem) - fixed)
    Nb = _pick_batch_block(N, per_sample, budget)
    need = fixed + Nb * per_sample
    vmem_limit = int(min(int(0.75 * phys_vmem),
                         max(16 * 2**20, int(1.4 * need))))

    # ---- pallas_call ----------------------------------------------------------
    def kernel(*refs):
        if identity:
            (xin, dwk_r, cm_r, g1_r, b1_r, w1_r, g2_r, b2_r, w2_r, bias_r,
             out_r, xpad, hcat, h2cat, xcat) = refs
            wsc_r = None
        else:
            (xin, dwk_r, cm_r, g1_r, b1_r, w1_r, g2_r, b2_r, w2_r, wsc_r,
             bias_r, out_r, xpad, hcat, h2cat, xcat) = refs
        _convnext_body(xin, dwk_r, cm_r, g1_r, b1_r, w1_r, g2_r, b2_r, w2_r,
                       wsc_r, bias_r, out_r, xpad, hcat, h2cat, xcat,
                       Nb=Nb, W=W, HW=HW, HWp=HWp, KH=KH, KW=KW, pad=pad,
                       data_start=data_start, G1=G1, G2=G2,
                       inv1=1.0 / (8.0 * HW), inv2=1.0 / (8.0 * HW),
                       eps=eps, identity=identity)

    in_specs = [
        pl.BlockSpec((Nb, Cin, HW), lambda b: (b, 0, 0)),
        pl.BlockSpec((Cin, KH * KW), lambda b: (0, 0)),
        pl.BlockSpec((KW, HWp), lambda b: (0, 0)),
        pl.BlockSpec((Cin, 1), lambda b: (0, 0)),
        pl.BlockSpec((Cin, 1), lambda b: (0, 0)),
        pl.BlockSpec((Cexp, Cin), lambda b: (0, 0)),
        pl.BlockSpec((Cexp, 1), lambda b: (0, 0)),
        pl.BlockSpec((Cexp, 1), lambda b: (0, 0)),
        pl.BlockSpec((Cout, Cexp), lambda b: (0, 0)),
    ]
    args = [x_flat, dwk, cmask, g1, b1, w1b, g2, b2, w2b]
    if not identity:
        in_specs.append(pl.BlockSpec((Cout, Cin), lambda b: (0, 0)))
        args.append(wscb)
    in_specs.append(pl.BlockSpec((Cout, 1), lambda b: (0, 0)))
    args.append(bias)

    scratch_shapes = [
        pltpu.VMEM((Cin, L), jnp.float32),                    # padded input
        pltpu.VMEM((Cin, Nb * HWp), jnp.bfloat16),            # hcat
        pltpu.VMEM((Cexp, Nb * HWp), jnp.bfloat16),           # h2cat
        pltpu.VMEM((Cin, Nb * HWp),
                   jnp.float32 if identity else jnp.bfloat16),  # shortcut input
    ]

    out = pl.pallas_call(
        kernel,
        out_shape=jax.ShapeDtypeStruct((N, Cout, HWp), jnp.float32),
        grid=(N // Nb,),
        in_specs=in_specs,
        out_specs=pl.BlockSpec((Nb, Cout, HWp), lambda b: (b, 0, 0)),
        scratch_shapes=scratch_shapes,
        compiler_params=pltpu.CompilerParams(
            dimension_semantics=("parallel",),
            vmem_limit_bytes=vmem_limit),
    )(*args)

    if HWp != HW:
        out = out[..., :HW]
    return out.reshape(N, Cout, H, W)      # free reshape back to NCHW


# ----------------------- pure-JAX reference (NCHW) -----------------------
def _ref_group_norm(x, groups, gamma, beta, eps=1e-5):
    N, C, H, W = x.shape
    xg = x.reshape(N, groups, C // groups, H, W)
    mean = xg.mean(axis=(2, 3, 4), keepdims=True)
    var = ((xg - mean) ** 2).mean(axis=(2, 3, 4), keepdims=True)
    xn = ((xg - mean) / jnp.sqrt(var + eps)).reshape(N, C, H, W)
    return xn * gamma[None, :, None, None] + beta[None, :, None, None]


def reference_forward(x, params, *, kernel_size, stride, padding):
    KH, KW = kernel_size
    N, Cin, H, W = x.shape
    Cexp = params["pw1_w"].shape[0]
    Cout = params["pw2_w"].shape[0]
    y = lax.conv_general_dilated(
        x, params["dw_w"], (stride, stride),
        [(padding, padding), (padding, padding)],
        feature_group_count=Cin,
        dimension_numbers=("NCHW", "OIHW", "NCHW"))
    y = _ref_group_norm(y, Cin // 8, params["gn1_g"], params["gn1_b"])
    y = y * jax.nn.sigmoid(y)
    y = jnp.einsum("nchw,oc->nohw", y, params["pw1_w"].reshape(Cexp, Cin))
    y = _ref_group_norm(y, Cexp // 8, params["gn2_g"], params["gn2_b"])
    y = y * jax.nn.sigmoid(y)
    y = jnp.einsum("nchw,oc->nohw", y, params["pw2_w"].reshape(Cout, Cexp)) \
        + params["pw2_b"][None, :, None, None]
    if Cin != Cout:
        sc = jnp.einsum("nchw,oc->nohw", x, params["sc_w"].reshape(Cout, Cin)) \
            + params["sc_b"][None, :, None, None]
    else:
        sc = x
    return y + sc


if __name__ == "__main__":
    def make_params(key, Cin, Cexp, Cout, K):
        ks = jax.random.split(key, 10)
        p = {
            "dw_w":  jax.random.normal(ks[0], (Cin, 1, K, K), jnp.float32) * 0.2,
            "gn1_g": 1.0 + 0.1 * jax.random.normal(ks[1], (Cin,), jnp.float32),
            "gn1_b": 0.1 * jax.random.normal(ks[2], (Cin,), jnp.float32),
            "pw1_w": jax.random.normal(ks[3], (Cexp, Cin, 1, 1), jnp.float32) * 0.2,
            "gn2_g": 1.0 + 0.1 * jax.random.normal(ks[4], (Cexp,), jnp.float32),
            "gn2_b": 0.1 * jax.random.normal(ks[5], (Cexp,), jnp.float32),
            "pw2_w": jax.random.normal(ks[6], (Cout, Cexp, 1, 1), jnp.float32) * 0.2,
            "pw2_b": 0.1 * jax.random.normal(ks[7], (Cout,), jnp.float32),
        }
        if Cin != Cout:
            p["sc_w"] = jax.random.normal(ks[8], (Cout, Cin, 1, 1), jnp.float32) * 0.2
            p["sc_b"] = 0.1 * jax.random.normal(ks[9], (Cout,), jnp.float32)
        return p

    key = jax.random.PRNGKey(0)
    k1, k2, k3, k4 = jax.random.split(key, 4)
    K, stride, pad = 3, 1, 1
    H = W = 16

    configs = [
        # (N, Cin, Cexp, Cout, param_key, x_key)
        (2, 8, 32, 16, k1, k2),    # Cin != Cout -> 1x1-conv shortcut
        (2, 16, 32, 16, k3, k4),   # Cin == Cout -> identity shortcut
    ]
    for (N, Cin, Cexp, Cout, kp, kx) in configs:
        params = make_params(kp, Cin, Cexp, Cout, K)
        x = jax.random.normal(kx, (N, Cin, H, W), jnp.float32)

        out = convnext_forward(x, params, kernel_size=(K, K), stride=stride, padding=pad)
        out = jax.block_until_ready(out)
        ref = reference_forward(x, params, kernel_size=(K, K), stride=stride, padding=pad)
        ref = jax.block_until_ready(ref)

        assert out.shape == (N, Cout, H, W), out.shape
        # tolerance leaves headroom for the bf16 MXU operands and the approx
        # (EUP) reciprocal in SiLU; structural errors would be ~O(1).
        if not jnp.allclose(out, ref, atol=5e-2, rtol=5e-2):
            max_err = float(jnp.max(jnp.abs(out - ref)))
            raise AssertionError(
                f"kernel/reference mismatch (Cin={Cin}, Cout={Cout}): "
                f"max abs err = {max_err}")

    print("KERNEL_OK")
</pallas_src>

<mosaic_0001>
module attributes {stable_mosaic.version = 11 : i64} {
  func.func @kernel(%arg0: i32, %arg1: memref<1x8x256xf32, #tpu.memory_space<vmem>>, %arg2: memref<8x9xf32, #tpu.memory_space<vmem>>, %arg3: memref<3x256xf32, #tpu.memory_space<vmem>>, %arg4: memref<8x1xf32, #tpu.memory_space<vmem>>, %arg5: memref<8x1xf32, #tpu.memory_space<vmem>>, %arg6: memref<32x8xbf16, #tpu.memory_space<vmem>>, %arg7: memref<32x1xf32, #tpu.memory_space<vmem>>, %arg8: memref<32x1xf32, #tpu.memory_space<vmem>>, %arg9: memref<16x32xbf16, #tpu.memory_space<vmem>>, %arg10: memref<16x8xbf16, #tpu.memory_space<vmem>>, %arg11: memref<16x1xf32, #tpu.memory_space<vmem>>, %arg12: memref<1x16x256xf32, #tpu.memory_space<vmem>>, %arg13: memref<8x512xf32, #tpu.memory_space<vmem>>, %arg14: memref<8x256xbf16, #tpu.memory_space<vmem>>, %arg15: memref<32x256xbf16, #tpu.memory_space<vmem>>, %arg16: memref<8x256xbf16, #tpu.memory_space<vmem>>) attributes {dimension_semantics = [#tpu.dimension_semantics<parallel>], iteration_bounds = array<i64: 2>, scalar_prefetch = 0 : i64, scratch_operands = 4 : i64, tpu.core_type = #tpu.core_type<tc>, window_params = [{transform_indices = @transform_0, window_bounds = array<i64: 1, 8, 256>}, {pipeline_mode = #tpu.pipeline_mode<synchronous>, transform_indices = @transform_1, window_bounds = array<i64: 8, 9>}, {pipeline_mode = #tpu.pipeline_mode<synchronous>, transform_indices = @transform_2, window_bounds = array<i64: 3, 256>}, {pipeline_mode = #tpu.pipeline_mode<synchronous>, transform_indices = @transform_3, window_bounds = array<i64: 8, 1>}, {pipeline_mode = #tpu.pipeline_mode<synchronous>, transform_indices = @transform_4, window_bounds = array<i64: 8, 1>}, {pipeline_mode = #tpu.pipeline_mode<synchronous>, transform_indices = @transform_5, window_bounds = array<i64: 32, 8>}, {pipeline_mode = #tpu.pipeline_mode<synchronous>, transform_indices = @transform_6, window_bounds = array<i64: 32, 1>}, {pipeline_mode = #tpu.pipeline_mode<synchronous>, transform_indices = @transform_7, window_bounds = array<i64: 32, 1>}, {pipeline_mode = #tpu.pipeline_mode<synchronous>, transform_indices = @transform_8, window_bounds = array<i64: 16, 32>}, {pipeline_mode = #tpu.pipeline_mode<synchronous>, transform_indices = @transform_9, window_bounds = array<i64: 16, 8>}, {pipeline_mode = #tpu.pipeline_mode<synchronous>, transform_indices = @transform_10, window_bounds = array<i64: 16, 1>}, {transform_indices = @transform_11, window_bounds = array<i64: 1, 16, 256>}]} {
    %cst = arith.constant 0.000000e+00 : f32
    %0 = vector.broadcast %cst : f32 to vector<8x512xf32>
    %c0 = arith.constant 0 : index
    %c0_0 = arith.constant 0 : index
    %1 = vector.load %arg13[%c0, %c0_0] : memref<8x512xf32, #tpu.memory_space<vmem>>, vector<8x512xf32>
    tpu.vector_store %arg13[%c0, %c0_0], %0 {strides = array<i32>} : memref<8x512xf32, #tpu.memory_space<vmem>>, vector<8x512xf32>,
    %c0_1 = arith.constant 0 : index
    %c0_2 = arith.constant 0 : index
    %c0_3 = arith.constant 0 : index
    %2 = vector.load %arg1[%c0_1, %c0_2, %c0_3] : memref<1x8x256xf32, #tpu.memory_space<vmem>>, vector<1x8x256xf32>
    %3 = vector.shape_cast %2 : vector<1x8x256xf32> to vector<8x256xf32>
    %c0_4 = arith.constant 0 : index
    %c128 = arith.constant 128 : index
    %4 = vector.load %arg13[%c0_4, %c128] : memref<8x512xf32, #tpu.memory_space<vmem>>, vector<8x256xf32>
    tpu.vector_store %arg13[%c0_4, %c128], %3 {strides = array<i32>} : memref<8x512xf32, #tpu.memory_space<vmem>>, vector<8x256xf32>,
    %5 = arith.truncf %3 : vector<8x256xf32> to vector<8x256xbf16>
    %c0_5 = arith.constant 0 : index
    %c0_6 = arith.constant 0 : index
    %6 = vector.load %arg16[%c0_5, %c0_6] : memref<8x256xbf16, #tpu.memory_space<vmem>>, vector<8x256xbf16>
    tpu.vector_store %arg16[%c0_5, %c0_6], %5 {strides = array<i32>} : memref<8x256xbf16, #tpu.memory_space<vmem>>, vector<8x256xbf16>,
    %c0_7 = arith.constant 0 : index
    %c111 = arith.constant 111 : index
    %7 = vector.load %arg13[%c0_7, %c111] : memref<8x512xf32, #tpu.memory_space<vmem>>, vector<8x256xf32>
    %c0_8 = arith.constant 0 : index
    %c0_9 = arith.constant 0 : index
    %8 = vector.load %arg2[%c0_8, %c0_9] : memref<8x9xf32, #tpu.memory_space<vmem>>, vector<8x1xf32>
    %9 = vector.broadcast %8 : vector<8x1xf32> to vector<8x256xf32>
    %10 = arith.mulf %7, %9 : vector<8x256xf32>
    %c0_10 = arith.constant 0 : index
    %c127 = arith.constant 127 : index
    %11 = vector.load %arg13[%c0_10, %c127] : memref<8x512xf32, #tpu.memory_space<vmem>>, vector<8x256xf32>
    %c0_11 = arith.constant 0 : index
    %c3 = arith.constant 3 : index
    %12 = vector.load %arg2[%c0_11, %c3] : memref<8x9xf32, #tpu.memory_space<vmem>>, vector<8x1xf32>
    %13 = vector.broadcast %12 : vector<8x1xf32> to vector<8x256xf32>
    %14 = arith.mulf %11, %13 : vector<8x256xf32>
    %15 = arith.addf %10, %14 : vector<8x256xf32>
    %c0_12 = arith.constant 0 : index
    %c143 = arith.constant 143 : index
    %16 = vector.load %arg13[%c0_12, %c143] : memref<8x512xf32, #tpu.memory_space<vmem>>, vector<8x256xf32>
    %c0_13 = arith.constant 0 : index
    %c6 = arith.constant 6 : index
    %17 = vector.load %arg2[%c0_13, %c6] : memref<8x9xf32, #tpu.memory_space<vmem>>, vector<8x1xf32>
    %18 = vector.broadcast %17 : vector<8x1xf32> to vector<8x256xf32>
    %19 = arith.mulf %16, %18 : vector<8x256xf32>
    %20 = arith.addf %15, %19 : vector<8x256xf32>
    %c0_14 = arith.constant 0 : index
    %c0_15 = arith.constant 0 : index
    %21 = vector.load %arg3[%c0_14, %c0_15] : memref<3x256xf32, #tpu.memory_space<vmem>>, vector<1x256xf32>
    %22 = vector.broadcast %21 : vector<1x256xf32> to vector<8x256xf32>
    %23 = arith.mulf %20, %22 : vector<8x256xf32>
    %c0_16 = arith.constant 0 : index
    %c112 = arith.constant 112 : index
    %24 = vector.load %arg13[%c0_16, %c112] : memref<8x512xf32, #tpu.memory_space<vmem>>, vector<8x256xf32>
    %c0_17 = arith.constant 0 : index
    %c1 = arith.constant 1 : index
    %25 = vector.load %arg2[%c0_17, %c1] : memref<8x9xf32, #tpu.memory_space<vmem>>, vector<8x1xf32>
    %26 = vector.broadcast %25 : vector<8x1xf32> to vector<8x256xf32>
    %27 = arith.mulf %24, %26 : vector<8x256xf32>
    %c0_18 = arith.constant 0 : index
    %c128_19 = arith.constant 128 : index
    %28 = vector.load %arg13[%c0_18, %c128_19] : memref<8x512xf32, #tpu.memory_space<vmem>>, vector<8x256xf32>
    %c0_20 = arith.constant 0 : index
    %c4 = arith.constant 4 : index
    %29 = vector.load %arg2[%c0_20, %c4] : memref<8x9xf32, #tpu.memory_space<vmem>>, vector<8x1xf32>
    %30 = vector.broadcast %29 : vector<8x1xf32> to vector<8x256xf32>
    %31 = arith.mulf %28, %30 : vector<8x256xf32>
    %32 = arith.addf %27, %31 : vector<8x256xf32>
    %c0_21 = arith.constant 0 : index
    %c144 = arith.constant 144 : index
    %33 = vector.load %arg13[%c0_21, %c144] : memref<8x512xf32, #tpu.memory_space<vmem>>, vector<8x256xf32>
    %c0_22 = arith.constant 0 : index
    %c7 = arith.constant 7 : index
    %34 = vector.load %arg2[%c0_22, %c7] : memref<8x9xf32, #tpu.memory_space<vmem>>, vector<8x1xf32>
    %35 = vector.broadcast %34 : vector<8x1xf32> to vector<8x256xf32>
    %36 = arith.mulf %33, %35 : vector<8x256xf32>
    %37 = arith.addf %32, %36 : vector<8x256xf32>
    %c1_23 = arith.constant 1 : index
    %c0_24 = arith.constant 0 : index
    %38 = vector.load %arg3[%c1_23, %c0_24] : memref<3x256xf32, #tpu.memory_space<vmem>>, vector<1x256xf32>
    %39 = vector.broadcast %38 : vector<1x256xf32> to vector<8x256xf32>
    %40 = arith.mulf %37, %39 : vector<8x256xf32>
    %41 = arith.addf %23, %40 : vector<8x256xf32>
    %c0_25 = arith.constant 0 : index
    %c113 = arith.constant 113 : index
    %42 = vector.load %arg13[%c0_25, %c113] : memref<8x512xf32, #tpu.memory_space<vmem>>, vector<8x256xf32>
    %c0_26 = arith.constant 0 : index
    %c2 = arith.constant 2 : index
    %43 = vector.load %arg2[%c0_26, %c2] : memref<8x9xf32, #tpu.memory_space<vmem>>, vector<8x1xf32>
    %44 = vector.broadcast %43 : vector<8x1xf32> to vector<8x256xf32>
    %45 = arith.mulf %42, %44 : vector<8x256xf32>
    %c0_27 = arith.constant 0 : index
    %c129 = arith.constant 129 : index
    %46 = vector.load %arg13[%c0_27, %c129] : memref<8x512xf32, #tpu.memory_space<vmem>>, vector<8x256xf32>
    %c0_28 = arith.constant 0 : index
    %c5 = arith.constant 5 : index
    %47 = vector.load %arg2[%c0_28, %c5] : memref<8x9xf32, #tpu.memory_space<vmem>>, vector<8x1xf32>
    %48 = vector.broadcast %47 : vector<8x1xf32> to vector<8x256xf32>
    %49 = arith.mulf %46, %48 : vector<8x256xf32>
    %50 = arith.addf %45, %49 : vector<8x256xf32>
    %c0_29 = arith.constant 0 : index
    %c145 = arith.constant 145 : index
    %51 = vector.load %arg13[%c0_29, %c145] : memref<8x512xf32, #tpu.memory_space<vmem>>, vector<8x256xf32>
    %c0_30 = arith.constant 0 : index
    %c8 = arith.constant 8 : index
    %52 = vector.load %arg2[%c0_30, %c8] : memref<8x9xf32, #tpu.memory_space<vmem>>, vector<8x1xf32>
    %53 = vector.broadcast %52 : vector<8x1xf32> to vector<8x256xf32>
    %54 = arith.mulf %51, %53 : vector<8x256xf32>
    %55 = arith.addf %50, %54 : vector<8x256xf32>
    %c2_31 = arith.constant 2 : index
    %c0_32 = arith.constant 0 : index
    %56 = vector.load %arg3[%c2_31, %c0_32] : memref<3x256xf32, #tpu.memory_space<vmem>>, vector<1x256xf32>
    %57 = vector.broadcast %56 : vector<1x256xf32> to vector<8x256xf32>
    %58 = arith.mulf %55, %57 : vector<8x256xf32>
    %59 = arith.addf %41, %58 : vector<8x256xf32>
    %c0_33 = arith.constant 0 : index
    %c0_34 = arith.constant 0 : index
    %60 = vector.load %arg4[%c0_33, %c0_34] : memref<8x1xf32, #tpu.memory_space<vmem>>, vector<8x1xf32>
    %c0_35 = arith.constant 0 : index
    %c0_36 = arith.constant 0 : index
    %61 = vector.load %arg5[%c0_35, %c0_36] : memref<8x1xf32, #tpu.memory_space<vmem>>, vector<8x1xf32>
    %62 = vector.shape_cast %59 : vector<8x256xf32> to vector<1x8x256xf32>
    %cst_37 = arith.constant dense<0.000000e+00> : vector<1x8xf32>
    %63 = vector.multi_reduction <add>, %62, %cst_37 [2] : vector<1x8x256xf32> to vector<1x8xf32>
    %64 = vector.shape_cast %63 : vector<1x8xf32> to vector<1x8x1xf32>
    %cst_38 = arith.constant dense<0.000000e+00> : vector<1x1xf32>
    %65 = vector.multi_reduction <add>, %64, %cst_38 [1] : vector<1x8x1xf32> to vector<1x1xf32>
    %66 = vector.shape_cast %65 : vector<1x1xf32> to vector<1x1x1xf32>
    %67 = arith.mulf %62, %62 : vector<1x8x256xf32>
    %cst_39 = arith.constant dense<0.000000e+00> : vector<1x8xf32>
    %68 = vector.multi_reduction <add>, %67, %cst_39 [2] : vector<1x8x256xf32> to vector<1x8xf32>
    %69 = vector.shape_cast %68 : vector<1x8xf32> to vector<1x8x1xf32>
    %cst_40 = arith.constant dense<0.000000e+00> : vector<1x1xf32>
    %70 = vector.multi_reduction <add>, %69, %cst_40 [1] : vector<1x8x1xf32> to vector<1x1xf32>
    %71 = vector.shape_cast %70 : vector<1x1xf32> to vector<1x1x1xf32>
    %cst_41 = arith.constant 4.8828125E-4 : f32
    %72 = vector.broadcast %cst_41 : f32 to vector<1x1x1xf32>
    %73 = arith.mulf %66, %72 : vector<1x1x1xf32>
    %cst_42 = arith.constant 4.8828125E-4 : f32
    %74 = vector.broadcast %cst_42 : f32 to vector<1x1x1xf32>
    %75 = arith.mulf %71, %74 : vector<1x1x1xf32>
    %76 = arith.mulf %73, %73 : vector<1x1x1xf32>
    %77 = arith.subf %75, %76 : vector<1x1x1xf32>
    %cst_43 = arith.constant 0.000000e+00 : f32
    %78 = vector.broadcast %cst_43 : f32 to vector<1x1x1xf32>
    %79 = arith.maximumf %77, %78 : vector<1x1x1xf32>
    %cst_44 = arith.constant 9.99999974E-6 : f32
    %80 = vector.broadcast %cst_44 : f32 to vector<1x1x1xf32>
    %81 = arith.addf %79, %80 : vector<1x1x1xf32>
    %82 = math.rsqrt %81 : vector<1x1x1xf32>
    %83 = vector.shape_cast %60 : vector<8x1xf32> to vector<1x8x1xf32>
    %84 = vector.shape_cast %61 : vector<8x1xf32> to vector<1x8x1xf32>
    %85 = vector.broadcast %82 : vector<1x1x1xf32> to vector<1x8x1xf32>
    %86 = arith.mulf %85, %83 : vector<1x8x1xf32>
    %87 = vector.shape_cast %86 : vector<1x8x1xf32> to vector<8x1xf32>
    %88 = arith.mulf %73, %82 : vector<1x1x1xf32>
    %89 = vector.broadcast %88 : vector<1x1x1xf32> to vector<1x8x1xf32>
    %90 = arith.mulf %89, %83 : vector<1x8x1xf32>
    %91 = arith.subf %84, %90 : vector<1x8x1xf32>
    %92 = vector.shape_cast %91 : vector<1x8x1xf32> to vector<8x1xf32>
    %93 = vector.broadcast %87 : vector<8x1xf32> to vector<8x256xf32>
    %94 = arith.mulf %59, %93 : vector<8x256xf32>
    %95 = vector.broadcast %92 : vector<8x1xf32> to vector<8x256xf32>
    %96 = arith.addf %94, %95 : vector<8x256xf32>
    %cst_45 = arith.constant 0.000000e+00 : f32
    %97 = vector.broadcast %cst_45 : f32 to vector<8x256xf32>
    %98 = arith.subf %97, %96 : vector<8x256xf32>
    %99 = math.exp %98 : vector<8x256xf32>
    %cst_46 = arith.constant 1.000000e+00 : f32
    %100 = vector.broadcast %cst_46 : f32 to vector<8x256xf32>
    %101 = arith.addf %100, %99 : vector<8x256xf32>
    %102 = tpu.reciprocal %101 {approx = true} : vector<8x256xf32> -> vector<8x256xf32>
    %103 = arith.mulf %96, %102 : vector<8x256xf32>
    %104 = arith.truncf %103 : vector<8x256xf32> to vector<8x256xbf16>
    %c0_47 = arith.constant 0 : index
    %c0_48 = arith.constant 0 : index
    %105 = vector.load %arg14[%c0_47, %c0_48] : memref<8x256xbf16, #tpu.memory_space<vmem>>, vector<8x256xbf16>
    tpu.vector_store %arg14[%c0_47, %c0_48], %104 {strides = array<i32>} : memref<8x256xbf16, #tpu.memory_space<vmem>>, vector<8x256xbf16>,
    %c0_49 = arith.constant 0 : index
    %c0_50 = arith.constant 0 : index
    %106 = vector.load %arg6[%c0_49, %c0_50] : memref<32x8xbf16, #tpu.memory_space<vmem>>, vector<32x8xbf16>
    %c0_51 = arith.constant 0 : index
    %c0_52 = arith.constant 0 : index
    %107 = vector.load %arg14[%c0_51, %c0_52] : memref<8x256xbf16, #tpu.memory_space<vmem>>, vector<8x256xbf16>
    %cst_53 = arith.constant dense<0.000000e+00> : vector<32x256xf32>
    %108 = tpu.matmul %106, %107, %cst_53 {dimension_numbers = #tpu.dot_dimension_numbers<[1], [0], [0], [1], [0, 0, 1, 1], [], []>} : vector<32x8xbf16>, vector<8x256xbf16>, vector<32x256xf32> -> vector<32x256xf32>
    %c0_54 = arith.constant 0 : index
    %c0_55 = arith.constant 0 : index
    %109 = vector.load %arg7[%c0_54, %c0_55] : memref<32x1xf32, #tpu.memory_space<vmem>>, vector<32x1xf32>
    %c0_56 = arith.constant 0 : index
    %c0_57 = arith.constant 0 : index
    %110 = vector.load %arg8[%c0_56, %c0_57] : memref<32x1xf32, #tpu.memory_space<vmem>>, vector<32x1xf32>
    %111 = vector.shape_cast %108 : vector<32x256xf32> to vector<4x8x256xf32>
    %cst_58 = arith.constant dense<0.000000e+00> : vector<4x8xf32>
    %112 = vector.multi_reduction <add>, %111, %cst_58 [2] : vector<4x8x256xf32> to vector<4x8xf32>
    %113 = vector.shape_cast %112 : vector<4x8xf32> to vector<4x8x1xf32>
    %cst_59 = arith.constant dense<0.000000e+00> : vector<4x1xf32>
    %114 = vector.multi_reduction <add>, %113, %cst_59 [1] : vector<4x8x1xf32> to vector<4x1xf32>
    %115 = vector.shape_cast %114 : vector<4x1xf32> to vector<4x1x1xf32>
    %116 = arith.mulf %111, %111 : vector<4x8x256xf32>
    %cst_60 = arith.constant dense<0.000000e+00> : vector<4x8xf32>
    %117 = vector.multi_reduction <add>, %116, %cst_60 [2] : vector<4x8x256xf32> to vector<4x8xf32>
    %118 = vector.shape_cast %117 : vector<4x8xf32> to vector<4x8x1xf32>
    %cst_61 = arith.constant dense<0.000000e+00> : vector<4x1xf32>
    %119 = vector.multi_reduction <add>, %118, %cst_61 [1] : vector<4x8x1xf32> to vector<4x1xf32>
    %120 = vector.shape_cast %119 : vector<4x1xf32> to vector<4x1x1xf32>
    %cst_62 = arith.constant 4.8828125E-4 : f32
    %121 = vector.broadcast %cst_62 : f32 to vector<4x1x1xf32>
    %122 = arith.mulf %115, %121 : vector<4x1x1xf32>
    %cst_63 = arith.constant 4.8828125E-4 : f32
    %123 = vector.broadcast %cst_63 : f32 to vector<4x1x1xf32>
    %124 = arith.mulf %120, %123 : vector<4x1x1xf32>
    %125 = arith.mulf %122, %122 : vector<4x1x1xf32>
    %126 = arith.subf %124, %125 : vector<4x1x1xf32>
    %cst_64 = arith.constant 0.000000e+00 : f32
    %127 = vector.broadcast %cst_64 : f32 to vector<4x1x1xf32>
    %128 = arith.maximumf %126, %127 : vector<4x1x1xf32>
    %cst_65 = arith.constant 9.99999974E-6 : f32
    %129 = vector.broadcast %cst_65 : f32 to vector<4x1x1xf32>
    %130 = arith.addf %128, %129 : vector<4x1x1xf32>
    %131 = math.rsqrt %130 : vector<4x1x1xf32>
    %132 = vector.shape_cast %109 : vector<32x1xf32> to vector<4x8x1xf32>
    %133 = vector.shape_cast %110 : vector<32x1xf32> to vector<4x8x1xf32>
    %134 = vector.broadcast %131 : vector<4x1x1xf32> to vector<4x8x1xf32>
    %135 = arith.mulf %134, %132 : vector<4x8x1xf32>
    %136 = vector.shape_cast %135 : vector<4x8x1xf32> to vector<32x1xf32>
    %137 = arith.mulf %122, %131 : vector<4x1x1xf32>
    %138 = vector.broadcast %137 : vector<4x1x1xf32> to vector<4x8x1xf32>
    %139 = arith.mulf %138, %132 : vector<4x8x1xf32>
    %140 = arith.subf %133, %139 : vector<4x8x1xf32>
    %141 = vector.shape_cast %140 : vector<4x8x1xf32> to vector<32x1xf32>
    %142 = vector.broadcast %136 : vector<32x1xf32> to vector<32x256xf32>
    %143 = arith.mulf %108, %142 : vector<32x256xf32>
    %144 = vector.broadcast %141 : vector<32x1xf32> to vector<32x256xf32>
    %145 = arith.addf %143, %144 : vector<32x256xf32>
    %cst_66 = arith.constant 0.000000e+00 : f32
    %146 = vector.broadcast %cst_66 : f32 to vector<32x256xf32>
    %147 = arith.subf %146, %145 : vector<32x256xf32>
    %148 = math.exp %147 : vector<32x256xf32>
    %cst_67 = arith.constant 1.000000e+00 : f32
    %149 = vector.broadcast %cst_67 : f32 to vector<32x256xf32>
    %150 = arith.addf %149, %148 : vector<32x256xf32>
    %151 = tpu.reciprocal %150 {approx = true} : vector<32x256xf32> -> vector<32x256xf32>
    %152 = arith.mulf %145, %151 : vector<32x256xf32>
    %153 = arith.truncf %152 : vector<32x256xf32> to vector<32x256xbf16>
    %c0_68 = arith.constant 0 : index
    %c0_69 = arith.constant 0 : index
    %154 = vector.load %arg15[%c0_68, %c0_69] : memref<32x256xbf16, #tpu.memory_space<vmem>>, vector<32x256xbf16>
    tpu.vector_store %arg15[%c0_68, %c0_69], %153 {strides = array<i32>} : memref<32x256xbf16, #tpu.memory_space<vmem>>, vector<32x256xbf16>,
    %c0_70 = arith.constant 0 : index
    %c0_71 = arith.constant 0 : index
    %155 = vector.load %arg9[%c0_70, %c0_71] : memref<16x32xbf16, #tpu.memory_space<vmem>>, vector<16x32xbf16>
    %c0_72 = arith.constant 0 : index
    %c0_73 = arith.constant 0 : index
    %156 = vector.load %arg15[%c0_72, %c0_73] : memref<32x256xbf16, #tpu.memory_space<vmem>>, vector<32x256xbf16>
    %cst_74 = arith.constant dense<0.000000e+00> : vector<16x256xf32>
    %157 = tpu.matmul %155, %156, %cst_74 {dimension_numbers = #tpu.dot_dimension_numbers<[1], [0], [0], [1], [0, 0, 1, 1], [], []>} : vector<16x32xbf16>, vector<32x256xbf16>, vector<16x256xf32> -> vector<16x256xf32>
    %c0_75 = arith.constant 0 : index
    %c0_76 = arith.constant 0 : index
    %158 = vector.load %arg10[%c0_75, %c0_76] : memref<16x8xbf16, #tpu.memory_space<vmem>>, vector<16x8xbf16>
    %c0_77 = arith.constant 0 : index
    %c0_78 = arith.constant 0 : index
    %159 = vector.load %arg16[%c0_77, %c0_78] : memref<8x256xbf16, #tpu.memory_space<vmem>>, vector<8x256xbf16>
    %cst_79 = arith.constant dense<0.000000e+00> : vector<16x256xf32>
    %160 = tpu.matmul %158, %159, %cst_79 {dimension_numbers = #tpu.dot_dimension_numbers<[1], [0], [0], [1], [0, 0, 1, 1], [], []>} : vector<16x8xbf16>, vector<8x256xbf16>, vector<16x256xf32> -> vector<16x256xf32>
    %161 = arith.addf %157, %160 : vector<16x256xf32>
    %c0_80 = arith.constant 0 : index
    %c0_81 = arith.constant 0 : index
    %162 = vector.load %arg11[%c0_80, %c0_81] : memref<16x1xf32, #tpu.memory_space<vmem>>, vector<16x1xf32>
    %163 = vector.broadcast %162 : vector<16x1xf32> to vector<16x256xf32>
    %164 = arith.addf %161, %163 : vector<16x256xf32>
    %c0_82 = arith.constant 0 : index
    %c0_83 = arith.constant 0 : index
    %c0_84 = arith.constant 0 : index
    %165 = vector.load %arg12[%c0_82, %c0_83, %c0_84] : memref<1x16x256xf32, #tpu.memory_space<vmem>>, vector<1x16x256xf32>
    %166 = vector.shape_cast %165 : vector<1x16x256xf32> to vector<16x256xf32>
    %167 = vector.shape_cast %164 : vector<16x256xf32> to vector<1x16x256xf32>
    tpu.vector_store %arg12[%c0_82, %c0_83, %c0_84], %167 {strides = array<i32>} : memref<1x16x256xf32, #tpu.memory_space<vmem>>, vector<1x16x256xf32>,
    return
  }
  func.func @transform_0(%arg0: i32) -> (i32, i32, i32) {
    %c0_i32 = arith.constant 0 : i32
    %c0_i32_0 = arith.constant 0 : i32
    %c0_i32_1 = arith.constant 0 : i32
    return %arg0, %c0_i32, %c0_i32_0 : i32, i32, i32
  }
  func.func @transform_1(%arg0: i32) -> (i32, i32) {
    %c0_i32 = arith.constant 0 : i32
    %c0_i32_0 = arith.constant 0 : i32
    %c0_i32_1 = arith.constant 0 : i32
    return %c0_i32, %c0_i32_0 : i32, i32
  }
  func.func @transform_2(%arg0: i32) -> (i32, i32) {
    %c0_i32 = arith.constant 0 : i32
    %c0_i32_0 = arith.constant 0 : i32
    %c0_i32_1 = arith.constant 0 : i32
    return %c0_i32, %c0_i32_0 : i32, i32
  }
  func.func @transform_3(%arg0: i32) -> (i32, i32) {
    %c0_i32 = arith.constant 0 : i32
    %c0_i32_0 = arith.constant 0 : i32
    %c0_i32_1 = arith.constant 0 : i32
    return %c0_i32, %c0_i32_0 : i32, i32
  }
  func.func @transform_4(%arg0: i32) -> (i32, i32) {
    %c0_i32 = arith.constant 0 : i32
    %c0_i32_0 = arith.constant 0 : i32
    %c0_i32_1 = arith.constant 0 : i32
    return %c0_i32, %c0_i32_0 : i32, i32
  }
  func.func @transform_5(%arg0: i32) -> (i32, i32) {
    %c0_i32 = arith.constant 0 : i32
    %c0_i32_0 = arith.constant 0 : i32
    %c0_i32_1 = arith.constant 0 : i32
    return %c0_i32, %c0_i32_0 : i32, i32
  }
  func.func @transform_6(%arg0: i32) -> (i32, i32) {
    %c0_i32 = arith.constant 0 : i32
    %c0_i32_0 = arith.constant 0 : i32
    %c0_i32_1 = arith.constant 0 : i32
    return %c0_i32, %c0_i32_0 : i32, i32
  }
  func.func @transform_7(%arg0: i32) -> (i32, i32) {
    %c0_i32 = arith.constant 0 : i32
    %c0_i32_0 = arith.constant 0 : i32
    %c0_i32_1 = arith.constant 0 : i32
    return %c0_i32, %c0_i32_0 : i32, i32
  }
  func.func @transform_8(%arg0: i32) -> (i32, i32) {
    %c0_i32 = arith.constant 0 : i32
    %c0_i32_0 = arith.constant 0 : i32
    %c0_i32_1 = arith.constant 0 : i32
    return %c0_i32, %c0_i32_0 : i32, i32
  }
  func.func @transform_9(%arg0: i32) -> (i32, i32) {
    %c0_i32 = arith.constant 0 : i32
    %c0_i32_0 = arith.constant 0 : i32
    %c0_i32_1 = arith.constant 0 : i32
    return %c0_i32, %c0_i32_0 : i32, i32
  }
  func.func @transform_10(%arg0: i32) -> (i32, i32) {
    %c0_i32 = arith.constant 0 : i32
    %c0_i32_0 = arith.constant 0 : i32
    %c0_i32_1 = arith.constant 0 : i32
    return %c0_i32, %c0_i32_0 : i32, i32
  }
  func.func @transform_11(%arg0: i32) -> (i32, i32, i32) {
    %c0_i32 = arith.constant 0 : i32
    %c0_i32_0 = arith.constant 0 : i32
    %c0_i32_1 = arith.constant 0 : i32
    return %arg0, %c0_i32, %c0_i32_0 : i32, i32, i32
  }
}

</mosaic_0001>

<llo_original>
// kernel: tpu_custom_call.1
$region0: #{tpu_custom_call.1}
  #allocation0 [shape = 'u32[]', space=smem, size = 0x4, offset = 0x4, fixed_abs, tag = 'smem constant byte address 0x4 - core index']
  #allocation1 [shape = 'u32[144,128]{1,0:T(1,128)}', space=vmem, size = 0x12000, scoped, tag = 'internal scratch']
  #allocation2 [shape = 'f32[8,512]{1,0:T(8,128)}', space=vmem, size = 0x4000, scoped, tag = 'scratch operand']
  #allocation3 [shape = 'bf16[8,256]{1,0:T(8,128)(2,1)}', space=vmem, size = 0x1000, scoped, tag = 'scratch operand']
  #allocation4 [shape = 'bf16[32,256]{1,0:T(16,128)(2,1)}', space=vmem, size = 0x4000, scoped, tag = 'scratch operand']
  #allocation5 [shape = 'bf16[8,256]{1,0:T(8,128)(2,1)}', space=vmem, size = 0x1000, scoped, tag = 'scratch operand']
  %s0 = inlined_call_operand.vmem [shape: f32[2,8,256], index: 0, kind: input, shape index: {}]
  %s1 = inlined_call_operand.vmem [shape: f32[8,9], index: 1, kind: input, shape index: {}]
  %s2 = inlined_call_operand.vmem [shape: f32[3,256], index: 2, kind: input, shape index: {}]
  %s3 = inlined_call_operand.vmem [shape: f32[8,1], index: 3, kind: input, shape index: {}]
  %s4 = inlined_call_operand.vmem [shape: f32[8,1], index: 4, kind: input, shape index: {}]
  %s5 = inlined_call_operand.vmem [shape: bf16[32,8], index: 5, kind: input, shape index: {}]
  %s6 = inlined_call_operand.vmem [shape: f32[32,1], index: 6, kind: input, shape index: {}]
  %s7 = inlined_call_operand.vmem [shape: f32[32,1], index: 7, kind: input, shape index: {}]
  %s8 = inlined_call_operand.vmem [shape: bf16[16,32], index: 8, kind: input, shape index: {}]
  %s9 = inlined_call_operand.vmem [shape: bf16[16,8], index: 9, kind: input, shape index: {}]
  %s10 = inlined_call_operand.vmem [shape: f32[16,1], index: 10, kind: input, shape index: {}]
  %s11 = inlined_call_operand.hbm [shape: f32[2,16,256], index: 11, kind: output, shape index: {}]
  %s12 = sld [smem:[#allocation0]]
  $region77: #{tpu_custom_call.1} parent=0
    _
  %s14 = ssub.s32 1, %s12
  %s15 = scalar_select 0, %s14, %s12
  $region1: #{tpu_custom_call.1} parent=0
    #allocation6 [shape = 'u8[32768]{0}', space=vmem, size = 0x8000, scoped, tag = 'output window, operand 0']
    #allocation7 [shape = 's32[2]{0}', space=sflag, size = 0x8, scoped, tag = 'scoped memory for tpu_custom_call.1']
    %16 = vsyncpa [#allocation7], 0
    %s17 = scalar_lea.sflag [#allocation7], 1
    %18 = vsyncpa %s17, 0
    loop: start=0, step=1, limit=4
    $region2: #{tpu_custom_call.1} parent=1 // loop_pre_header
      _
    $region3: #{tpu_custom_call.1} parent=1 // loop_header
      %s20 = sphi 0, %s24
      %p21 = scmp.ge.s32.totalorder %s20, 4
      %s30 = sphi 0, %s32
      %s33 = sphi 0, %s30
      %s34 = sphi 0, %s33
      %s50 = sphi 0, %s34
      %s54 = sphi 0, %s54
      %s56 = sphi 0, %s54
      %s57 = sphi 0, %s56
      %s71 = sphi 0, %s57
      %s75 = sphi 0, %s75
      %s77 = sphi 0, %s75
      %s78 = sphi 0, %s77
      %s92 = sphi 0, %s78
      %s96 = sphi 0, %s96
      %s98 = sphi 0, %s96
      %s99 = sphi 0, %s98
      %s113 = sphi 0, %s99
      %s117 = sphi 0, %s117
      %s119 = sphi 0, %s117
      %s120 = sphi 0, %s119
      %s134 = sphi 0, %s120
      %s138 = sphi 0, %s138
      %s140 = sphi 0, %s138
      %s141 = sphi 0, %s140
      %s155 = sphi 0, %s141
      %s159 = sphi 0, %s159
      %s161 = sphi 0, %s159
      %s162 = sphi 0, %s161
      %s176 = sphi 0, %s162
      %s180 = sphi 0, %s180
      %s182 = sphi 0, %s180
      %s183 = sphi 0, %s182
      %s197 = sphi 0, %s183
      %s201 = sphi 0, %s201
      %s203 = sphi 0, %s201
      %s204 = sphi 0, %s203
      %s218 = sphi 0, %s204
      %s222 = sphi 0, %s222
      %s224 = sphi 0, %s222
      %s225 = sphi 0, %s224
      %s239 = sphi 0, %s225
      %s243 = sphi 0, %s243
      %s245 = sphi 0, %s243
      %s246 = sphi 0, %s245
      %s260 = sphi 0, %s246
      %s266 = sphi 0, %s268
      %s269 = sphi 0, %s266
      %s270 = sphi 0, %s269
      %s286 = sphi 0, %s270
    $region4: #{tpu_custom_call.1} parent=1 // loop_header_branch
      %23 = sbr.rel (%p21) target = $region8
    $region5: #{tpu_custom_call.1} parent=1 // loop_body
      %s25 = ssub.s32 %s20, 1
      %s26 = ssub.s32 %s20, 2
      %s27 = sadd.s32 %s20, 1
      %s28 = ssub.s32 %s20, %s27
      %p29 = scmp.eq.s32.totalorder %s28, 0
      %s31 = sadd.s32 %s30, 1
      %s32 = scalar_select %p29, %s30, %s31
      %p35 = pneg %p29
      %p36 = scmp.eq.s32.totalorder %s20, 1
      %p37 = por %p35, %p36
      %p38 = scmp.ne.s32.totalorder %s30, %s33
      %p39 = scmp.eq.s32.totalorder %s20, 0
      %p40 = por %p38, %p39
      %p41 = scmp.ne.s32.totalorder %s30, %s33
      %p42 = scmp.eq.s32.totalorder %s25, 1
      %p43 = por %p41, %p42
      %p44 = scmp.ne.s32.totalorder %s33, %s34
      %p45 = scmp.eq.s32.totalorder %s25, 0
      %p46 = por %p44, %p45
      %p47 = scmp.ne.s32.totalorder %s33, %s34
      %p48 = scmp.eq.s32.totalorder %s26, 1
      %p49 = por %p47, %p48
      %p51 = scmp.ne.s32.totalorder %s34, %s50
      %p52 = scmp.eq.s32.totalorder %s26, 0
      %p53 = por %p51, %p52
      %s55 = sadd.s32 %s54, 1
      %p58 = scmp.eq.s32.totalorder %s20, 1
      %p59 = scmp.ne.s32.totalorder %s54, %s56
      %p60 = scmp.eq.s32.totalorder %s20, 0
      %p61 = por %p59, %p60
      %p62 = scmp.ne.s32.totalorder %s54, %s56
      %p63 = scmp.eq.s32.totalorder %s25, 1
      %p64 = por %p62, %p63
      %p65 = scmp.ne.s32.totalorder %s56, %s57
      %p66 = scmp.eq.s32.totalorder %s25, 0
      %p67 = por %p65, %p66
      %p68 = scmp.ne.s32.totalorder %s56, %s57
      %p69 = scmp.eq.s32.totalorder %s26, 1
      %p70 = por %p68, %p69
      %p72 = scmp.ne.s32.totalorder %s57, %s71
      %p73 = scmp.eq.s32.totalorder %s26, 0
      %p74 = por %p72, %p73
      %s76 = sadd.s32 %s75, 1
      %p79 = scmp.eq.s32.totalorder %s20, 1
      %p80 = scmp.ne.s32.totalorder %s75, %s77
      %p81 = scmp.eq.s32.totalorder %s20, 0
      %p82 = por %p80, %p81
      %p83 = scmp.ne.s32.totalorder %s75, %s77
      %p84 = scmp.eq.s32.totalorder %s25, 1
      %p85 = por %p83, %p84
      %p86 = scmp.ne.s32.totalorder %s77, %s78
      %p87 = scmp.eq.s32.totalorder %s25, 0
      %p88 = por %p86, %p87
      %p89 = scmp.ne.s32.totalorder %s77, %s78
      %p90 = scmp.eq.s32.totalorder %s26, 1
      %p91 = por %p89, %p90
      %p93 = scmp.ne.s32.totalorder %s78, %s92
      %p94 = scmp.eq.s32.totalorder %s26, 0
      %p95 = por %p93, %p94
      %s97 = sadd.s32 %s96, 1
      %p100 = scmp.eq.s32.totalorder %s20, 1
      %p101 = scmp.ne.s32.totalorder %s96, %s98
      %p102 = scmp.eq.s32.totalorder %s20, 0
      %p103 = por %p101, %p102
      %p104 = scmp.ne.s32.totalorder %s96, %s98
      %p105 = scmp.eq.s32.totalorder %s25, 1
      %p106 = por %p104, %p105
      %p107 = scmp.ne.s32.totalorder %s98, %s99
      %p108 = scmp.eq.s32.totalorder %s25, 0
      %p109 = por %p107, %p108
      %p110 = scmp.ne.s32.totalorder %s98, %s99
      %p111 = scmp.eq.s32.totalorder %s26, 1
      %p112 = por %p110, %p111
      %p114 = scmp.ne.s32.totalorder %s99, %s113
      %p115 = scmp.eq.s32.totalorder %s26, 0
      %p116 = por %p114, %p115
      %s118 = sadd.s32 %s117, 1
      %p121 = scmp.eq.s32.totalorder %s20, 1
      %p122 = scmp.ne.s32.totalorder %s117, %s119
      %p123 = scmp.eq.s32.totalorder %s20, 0
      %p124 = por %p122, %p123
      %p125 = scmp.ne.s32.totalorder %s117, %s119
      %p126 = scmp.eq.s32.totalorder %s25, 1
      %p127 = por %p125, %p126
      %p128 = scmp.ne.s32.totalorder %s119, %s120
      %p129 = scmp.eq.s32.totalorder %s25, 0
      %p130 = por %p128, %p129
      %p131 = scmp.ne.s32.totalorder %s119, %s120
      %p132 = scmp.eq.s32.totalorder %s26, 1
      %p133 = por %p131, %p132
      %p135 = scmp.ne.s32.totalorder %s120, %s134
      %p136 = scmp.eq.s32.totalorder %s26, 0
      %p137 = por %p135, %p136
      %s139 = sadd.s32 %s138, 1
      %p142 = scmp.eq.s32.totalorder %s20, 1
      %p143 = scmp.ne.s32.totalorder %s138, %s140
      %p144 = scmp.eq.s32.totalorder %s20, 0
      %p145 = por %p143, %p144
      %p146 = scmp.ne.s32.totalorder %s138, %s140
      %p147 = scmp.eq.s32.totalorder %s25, 1
      %p148 = por %p146, %p147
      %p149 = scmp.ne.s32.totalorder %s140, %s141
      %p150 = scmp.eq.s32.totalorder %s25, 0
      %p151 = por %p149, %p150
      %p152 = scmp.ne.s32.totalorder %s140, %s141
      %p153 = scmp.eq.s32.totalorder %s26, 1
      %p154 = por %p152, %p153
      %p156 = scmp.ne.s32.totalorder %s141, %s155
      %p157 = scmp.eq.s32.totalorder %s26, 0
      %p158 = por %p156, %p157
      %s160 = sadd.s32 %s159, 1
      %p163 = scmp.eq.s32.totalorder %s20, 1
      %p164 = scmp.ne.s32.totalorder %s159, %s161
      %p165 = scmp.eq.s32.totalorder %s20, 0
      %p166 = por %p164, %p165
      %p167 = scmp.ne.s32.totalorder %s159, %s161
      %p168 = scmp.eq.s32.totalorder %s25, 1
      %p169 = por %p167, %p168
      %p170 = scmp.ne.s32.totalorder %s161, %s162
      %p171 = scmp.eq.s32.totalorder %s25, 0
      %p172 = por %p170, %p171
      %p173 = scmp.ne.s32.totalorder %s161, %s162
      %p174 = scmp.eq.s32.totalorder %s26, 1
      %p175 = por %p173, %p174
      %p177 = scmp.ne.s32.totalorder %s162, %s176
      %p178 = scmp.eq.s32.totalorder %s26, 0
      %p179 = por %p177, %p178
      %s181 = sadd.s32 %s180, 1
      %p184 = scmp.eq.s32.totalorder %s20, 1
      %p185 = scmp.ne.s32.totalorder %s180, %s182
      %p186 = scmp.eq.s32.totalorder %s20, 0
      %p187 = por %p185, %p186
      %p188 = scmp.ne.s32.totalorder %s180, %s182
      %p189 = scmp.eq.s32.totalorder %s25, 1
      %p190 = por %p188, %p189
      %p191 = scmp.ne.s32.totalorder %s182, %s183
      %p192 = scmp.eq.s32.totalorder %s25, 0
      %p193 = por %p191, %p192
      %p194 = scmp.ne.s32.totalorder %s182, %s183
      %p195 = scmp.eq.s32.totalorder %s26, 1
      %p196 = por %p194, %p195
      %p198 = scmp.ne.s32.totalorder %s183, %s197
      %p199 = scmp.eq.s32.totalorder %s26, 0
      %p200 = por %p198, %p199
      %s202 = sadd.s32 %s201, 1
      %p205 = scmp.eq.s32.totalorder %s20, 1
      %p206 = scmp.ne.s32.totalorder %s201, %s203
      %p207 = scmp.eq.s32.totalorder %s20, 0
      %p208 = por %p206, %p207
      %p209 = scmp.ne.s32.totalorder %s201, %s203
      %p210 = scmp.eq.s32.totalorder %s25, 1
      %p211 = por %p209, %p210
      %p212 = scmp.ne.s32.totalorder %s203, %s204
      %p213 = scmp.eq.s32.totalorder %s25, 0
      %p214 = por %p212, %p213
      %p215 = scmp.ne.s32.totalorder %s203, %s204
      %p216 = scmp.eq.s32.totalorder %s26, 1
      %p217 = por %p215, %p216
      %p219 = scmp.ne.s32.totalorder %s204, %s218
      %p220 = scmp.eq.s32.totalorder %s26, 0
      %p221 = por %p219, %p220
      %s223 = sadd.s32 %s222, 1
      %p226 = scmp.eq.s32.totalorder %s20, 1
      %p227 = scmp.ne.s32.totalorder %s222, %s224
      %p228 = scmp.eq.s32.totalorder %s20, 0
      %p229 = por %p227, %p228
      %p230 = scmp.ne.s32.totalorder %s222, %s224
      %p231 = scmp.eq.s32.totalorder %s25, 1
      %p232 = por %p230, %p231
      %p233 = scmp.ne.s32.totalorder %s224, %s225
      %p234 = scmp.eq.s32.totalorder %s25, 0
      %p235 = por %p233, %p234
      %p236 = scmp.ne.s32.totalorder %s224, %s225
      %p237 = scmp.eq.s32.totalorder %s26, 1
      %p238 = por %p236, %p237
      %p240 = scmp.ne.s32.totalorder %s225, %s239
      %p241 = scmp.eq.s32.totalorder %s26, 0
      %p242 = por %p240, %p241
      %s244 = sadd.s32 %s243, 1
      %p247 = scmp.eq.s32.totalorder %s20, 1
      %p248 = scmp.ne.s32.totalorder %s243, %s245
      %p249 = scmp.eq.s32.totalorder %s20, 0
      %p250 = por %p248, %p249
      %p251 = scmp.ne.s32.totalorder %s243, %s245
      %p252 = scmp.eq.s32.totalorder %s25, 1
      %p253 = por %p251, %p252
      %p254 = scmp.ne.s32.totalorder %s245, %s246
      %p255 = scmp.eq.s32.totalorder %s25, 0
      %p256 = por %p254, %p255
      %p257 = scmp.ne.s32.totalorder %s245, %s246
      %p258 = scmp.eq.s32.totalorder %s26, 1
      %p259 = por %p257, %p258
      %p261 = scmp.ne.s32.totalorder %s246, %s260
      %p262 = scmp.eq.s32.totalorder %s26, 0
      %p263 = por %p261, %p262
      %s264 = ssub.s32 %s20, %s27
      %p265 = scmp.eq.s32.totalorder %s264, 0
      %s267 = sadd.s32 %s266, 1
      %s268 = scalar_select %p265, %s266, %s267
      %p271 = pneg %p265
      %p272 = scmp.eq.s32.totalorder %s20, 1
      %p273 = por %p271, %p272
      %p274 = scmp.ne.s32.totalorder %s266, %s269
      %p275 = scmp.eq.s32.totalorder %s20, 0
      %p276 = por %p274, %p275
      %p277 = scmp.ne.s32.totalorder %s266, %s269
      %p278 = scmp.eq.s32.totalorder %s25, 1
      %p279 = por %p277, %p278
      %p280 = scmp.ne.s32.totalorder %s269, %s270
      %p281 = scmp.eq.s32.totalorder %s25, 0
      %p282 = por %p280, %p281
      %p283 = scmp.ne.s32.totalorder %s269, %s270
      %p284 = scmp.eq.s32.totalorder %s26, 1
      %p285 = por %p283, %p284
      %p287 = scmp.ne.s32.totalorder %s270, %s286
      %p288 = scmp.eq.s32.totalorder %s26, 0
      %p289 = por %p287, %p288
      %p290 = scmp.le.s32.totalorder 1, %s20
      %p291 = scmp.lt.s32.totalorder %s20, 3
      %p292 = pnand %p290, %p291
      %p293 = pneg %p292
      // Predicated region
      $region9: #{tpu_custom_call.1} parent=5 // pred_check
        _
      $region10: #{tpu_custom_call.1} parent=5 // pred_check_branch
        %295 = sbr.rel (%p292) target = $region12
      $region11: #{tpu_custom_call.1} parent=5 // pred_region
        %s296 = ssub.s32 %s20, 1
        // Predicated region
        $region13: #{tpu_custom_call.1} parent=11 // pred_check
          %p297 = pneg %p67
        $region14: #{tpu_custom_call.1} parent=11 // pred_check_branch
          %299 = sbr.rel (%p297) target = $region16
        $region15: #{tpu_custom_call.1} parent=11 // pred_region
          _
        $region16: #{tpu_custom_call.1} parent=11 // pred_fallthru
          _
        // Predicated region
        $region17: #{tpu_custom_call.1} parent=11 // pred_check
          %p300 = pneg %p88
        $region18: #{tpu_custom_call.1} parent=11 // pred_check_branch
          %302 = sbr.rel (%p300) target = $region20
        $region19: #{tpu_custom_call.1} parent=11 // pred_region
          _
        $region20: #{tpu_custom_call.1} parent=11 // pred_fallthru
          _
        // Predicated region
        $region21: #{tpu_custom_call.1} parent=11 // pred_check
          %p303 = pneg %p109
        $region22: #{tpu_custom_call.1} parent=11 // pred_check_branch
          %305 = sbr.rel (%p303) target = $region24
        $region23: #{tpu_custom_call.1} parent=11 // pred_region
          _
        $region24: #{tpu_custom_call.1} parent=11 // pred_fallthru
          _
        // Predicated region
        $region25: #{tpu_custom_call.1} parent=11 // pred_check
          %p306 = pneg %p130
        $region26: #{tpu_custom_call.1} parent=11 // pred_check_branch
          %308 = sbr.rel (%p306) target = $region28
        $region27: #{tpu_custom_call.1} parent=11 // pred_region
          _
        $region28: #{tpu_custom_call.1} parent=11 // pred_fallthru
          _
        // Predicated region
        $region29: #{tpu_custom_call.1} parent=11 // pred_check
          %p309 = pneg %p151
        $region30: #{tpu_custom_call.1} parent=11 // pred_check_branch
          %311 = sbr.rel (%p309) target = $region32
        $region31: #{tpu_custom_call.1} parent=11 // pred_region
          _
        $region32: #{tpu_custom_call.1} parent=11 // pred_fallthru
          _
        // Predicated region
        $region33: #{tpu_custom_call.1} parent=11 // pred_check
          %p312 = pneg %p172
        $region34: #{tpu_custom_call.1} parent=11 // pred_check_branch
          %314 = sbr.rel (%p312) target = $region36
        $region35: #{tpu_custom_call.1} parent=11 // pred_region
          _
        $region36: #{tpu_custom_call.1} parent=11 // pred_fallthru
          _
        // Predicated region
        $region37: #{tpu_custom_call.1} parent=11 // pred_check
          %p315 = pneg %p193
        $region38: #{tpu_custom_call.1} parent=11 // pred_check_branch
          %317 = sbr.rel (%p315) target = $region40
        $region39: #{tpu_custom_call.1} parent=11 // pred_region
          _
        $region40: #{tpu_custom_call.1} parent=11 // pred_fallthru
          _
        // Predicated region
        $region41: #{tpu_custom_call.1} parent=11 // pred_check
          %p318 = pneg %p214
        $region42: #{tpu_custom_call.1} parent=11 // pred_check_branch
          %320 = sbr.rel (%p318) target = $region44
        $region43: #{tpu_custom_call.1} parent=11 // pred_region
          _
        $region44: #{tpu_custom_call.1} parent=11 // pred_fallthru
          _
        // Predicated region
        $region45: #{tpu_custom_call.1} parent=11 // pred_check
          %p321 = pneg %p235
        $region46: #{tpu_custom_call.1} parent=11 // pred_check_branch
          %323 = sbr.rel (%p321) target = $region48
        $region47: #{tpu_custom_call.1} parent=11 // pred_region
          _
        $region48: #{tpu_custom_call.1} parent=11 // pred_fallthru
          _
        // Predicated region
        $region49: #{tpu_custom_call.1} parent=11 // pred_check
          %p324 = pneg %p256
        $region50: #{tpu_custom_call.1} parent=11 // pred_check_branch
          %326 = sbr.rel (%p324) target = $region52
        $region51: #{tpu_custom_call.1} parent=11 // pred_region
          _
        $region52: #{tpu_custom_call.1} parent=11 // pred_fallthru
          _
      $region12: #{tpu_custom_call.1} parent=5 // pred_fallthru
        _
      %p327 = scmp.lt.s32.totalorder %s20, 2
      // Predicated region
      $region53: #{tpu_custom_call.1} parent=5 // pred_check
        %p328 = pneg %p327
      $region54: #{tpu_custom_call.1} parent=5 // pred_check_branch
        %330 = sbr.rel (%p328) target = $region56
      $region55: #{tpu_custom_call.1} parent=5 // pred_region
        // Predicated region
        $region57: #{tpu_custom_call.1} parent=55 // pred_check
          %p331 = pneg %p40
        $region58: #{tpu_custom_call.1} parent=55 // pred_check_branch
          %333 = sbr.rel (%p331) target = $region60
        $region59: #{tpu_custom_call.1} parent=55 // pred_region
          %p334 = scmp.lt.s32.totalorder %s20, 1
          %s335 = scalar_select %p334, %s20, 1
          %s336 = smul.addr %s335, 2
          %s337 = smul.addr %s336, 8
          %s338 = scalar_lea.vmem %s0, %s337
        $region60: #{tpu_custom_call.1} parent=55 // pred_fallthru
          _
      $region56: #{tpu_custom_call.1} parent=5 // pred_fallthru
        _
      %p339 = scmp.le.s32.totalorder 1, %s20
      %p340 = scmp.lt.s32.totalorder %s20, 3
      %p341 = pnand %p339, %p340
      %p342 = pneg %p341
      // Predicated region
      $region61: #{tpu_custom_call.1} parent=5 // pred_check
        _
      $region62: #{tpu_custom_call.1} parent=5 // pred_check_branch
        %344 = sbr.rel (%p341) target = $region64
      $region63: #{tpu_custom_call.1} parent=5 // pred_region
        %s345 = ssub.s32 %s20, 1
        %p346 = scmp.lt.s32.totalorder %s25, 1
        %s347 = scalar_select %p346, %s25, 1
        %s348 = smul.addr %s347, 2
        %s349 = smul.addr %s348, 8
        %s350 = scalar_lea.vmem %s0, %s349
        %p351 = pneg %p46
        %p352 = pneg %p43
        %p353 = pneg %p67
        %p354 = pneg %p64
        %p355 = pneg %p88
        %p356 = pneg %p85
        %p357 = pneg %p109
        %p358 = pneg %p106
        %p359 = pneg %p130
        %p360 = pneg %p127
        %p361 = pneg %p151
        %p362 = pneg %p148
        %p363 = pneg %p172
        %p364 = pneg %p169
        %p365 = pneg %p193
        %p366 = pneg %p190
        %p367 = pneg %p214
        %p368 = pneg %p211
        %p369 = pneg %p235
        %p370 = pneg %p232
        %p371 = pneg %p256
        %p372 = pneg %p253
        %p373 = pneg %p282
        %p374 = pneg %p279
        %s375 = sand.u32 %s269, 1
        %s376 = scalar_lea.sflag [#allocation7], %s375
        %s377 = sand.u32 %s269, 1
        %s378 = smul.addr %s377, 32
        %s379 = scalar_lea.vmem [#allocation6], %s378
        %p380 = scmp.lt.s32.totalorder %s25, 1
        %s381 = scalar_select %p380, %s25, 1
        %s382 = smul.addr %s381, 2
        %s383 = smul.addr %s382, 8
        %s384 = scalar_lea.vmem %s0, %s383
        %386 = vst [vmem:[#allocation2] sm:$0xff] 0.0
        %387 = vst [vmem:[#allocation2 + $0x8] sm:$0xff] 0.0
        %388 = vst [vmem:[#allocation2 + $0x10] sm:$0xff] 0.0
        %389 = vst [vmem:[#allocation2 + $0x18] sm:$0xff] 0.0
        %v390 = vld [vmem:[%s384] sm:$0xff]
        %v391 = vld [vmem:[%s384 + $0x8] sm:$0xff]
        %392 = vst [vmem:[#allocation2 + $0x8] sm:$0xff] %v390
        %393 = vst [vmem:[#allocation2 + $0x10] sm:$0xff] %v391
        %v394 = vpack.c.bf16 %v390, %v390
        %v395 = vpack.c.bf16 %v391, %v391
        %v398 = vunpack.c.l.b16 %v394
        %v399 = vunpack.c.l.b16 %v395
        %v400 = vpack.c.b16 %v399, %v398
        %402 = vst [vmem:[#allocation5] sm:$0xff] %v400
        %v403 = vld [vmem:[#allocation2] sm:$0xff]
        %v404 = vld [vmem:[#allocation2 + $0x8] sm:$0xff]
        %v405 = vld [vmem:[#allocation2 + $0x10] sm:$0xff]
        %v406 = vld [vmem:[%s1] sm:$0xff]
        %408 = vset.pattern.permute.xlu0 0
        %409 = vperm.xlu0 %408, %v406
        %v410 = vpop.permute.xlu0 %409
        %v412 = vmul.f32 %v403, %v410
        %v413 = vmul.f32 %v404, %v410
        %v414 = vmul.f32 %v405, %v410
        %415 = vset.pattern.permute.xlu0 3
        %416 = vperm.xlu0 %415, %v406
        %v417 = vpop.permute.xlu0 %416
        %v419 = vmul.f32 %v403, %v417
        %v420 = vmul.f32 %v404, %v417
        %v421 = vmul.f32 %v405, %v417
        %425 = vrot.lane.b32.xlu0 %v419, 112
        %v426 = vpop.permute.xlu0 %425
        %427 = vrot.lane.b32.xlu0 %v420, 112
        %v428 = vpop.permute.xlu0 %427
        %429 = vrot.lane.b32.xlu0 %v421, 112
        %v430 = vpop.permute.xlu0 %429
        %vm431 = vcmask 916480
        %v432 = vsel %vm431, %v426, %v428
        %v433 = vsel %vm431, %v428, %v430
        %v437 = vadd.f32 %v412, %v432
        %v438 = vadd.f32 %v413, %v433
        %v439 = vadd.f32 %v414, %v430
        %v440 = vld [vmem:[#allocation2 + $0x8] sm:$0xff]
        %v441 = vld [vmem:[#allocation2 + $0x10] sm:$0xff]
        %v442 = vld [vmem:[#allocation2 + $0x18] sm:$0xff]
        %443 = vset.pattern.permute.xlu0 6
        %444 = vperm.xlu0 %443, %v406
        %v445 = vpop.permute.xlu0 %444
        %v447 = vmul.f32 %v440, %v445
        %v448 = vmul.f32 %v441, %v445
        %v449 = vmul.f32 %v442, %v445
        %453 = vrot.lane.b32.xlu0 %v447, 96
        %v454 = vpop.permute.xlu0 %453
        %455 = vrot.lane.b32.xlu0 %v448, 96
        %v456 = vpop.permute.xlu0 %455
        %457 = vrot.lane.b32.xlu0 %v449, 96
        %v458 = vpop.permute.xlu0 %457
        %vm459 = vcmask 785408
        %v460 = vsel %vm459, %v454, %v456
        %v461 = vsel %vm459, %v456, %v458
        %v465 = vadd.f32 %v437, %v454
        %v466 = vadd.f32 %v438, %v460
        %v467 = vadd.f32 %v439, %v461
        %v468 = vld [vmem:[%s2] ss:$4 sm:$0x3]
        %v470 = vlaneseq
        %v471 = vshrl.u32 %v470, 7
        %v472 = vsub.s32 0, %v471
        %v473 = vrot.slane %v468, %v472
        %v474 = vlaneseq
        %v475 = vshrl.u32 %v474, 7
        %v476 = vsub.s32 1, %v475
        %v477 = vrot.slane %v468, %v476
        %478 = vrot.lane.b32.xlu0 %v473, 111
        %v479 = vpop.permute.xlu0 %478
        %480 = vrot.lane.b32.xlu0 %v477, 111
        %v481 = vpop.permute.xlu0 %480
        %vm482 = vcmask 908288
        %v483 = vsel %vm482, %v479, %v481
        %v487 = vmul.f32 %v465, %v479
        %v488 = vmul.f32 %v466, %v483
        %v489 = vmul.f32 %v467, %v481
        %490 = vset.pattern.permute.xlu0 1
        %491 = vperm.xlu0 %490, %v406
        %v492 = vpop.permute.xlu0 %491
        %v494 = vmul.f32 %v403, %v492
        %v495 = vmul.f32 %v404, %v492
        %v496 = vmul.f32 %v405, %v492
        %497 = vset.pattern.permute.xlu0 4
        %498 = vperm.xlu0 %497, %v406
        %v499 = vpop.permute.xlu0 %498
        %v501 = vmul.f32 %v404, %v499
        %v502 = vmul.f32 %v405, %v499
        %505 = vrot.lane.b32.xlu0 %v501, 112
        %v506 = vpop.permute.xlu0 %505
        %507 = vrot.lane.b32.xlu0 %v502, 112
        %v508 = vpop.permute.xlu0 %507
        %v509 = vsel %vm431, %v506, %v508
        %v513 = vadd.f32 %v494, %v506
        %v514 = vadd.f32 %v495, %v509
        %v515 = vadd.f32 %v496, %v508
        %516 = vset.pattern.permute.xlu0 7
        %517 = vperm.xlu0 %516, %v406
        %v518 = vpop.permute.xlu0 %517
        %v520 = vmul.f32 %v440, %v518
        %v521 = vmul.f32 %v441, %v518
        %v522 = vmul.f32 %v442, %v518
        %526 = vrot.lane.b32.xlu0 %v520, 96
        %v527 = vpop.permute.xlu0 %526
        %528 = vrot.lane.b32.xlu0 %v521, 96
        %v529 = vpop.permute.xlu0 %528
        %530 = vrot.lane.b32.xlu0 %v522, 96
        %v531 = vpop.permute.xlu0 %530
        %v532 = vsel %vm459, %v527, %v529
        %v533 = vsel %vm459, %v529, %v531
        %v537 = vadd.f32 %v513, %v527
        %v538 = vadd.f32 %v514, %v532
        %v539 = vadd.f32 %v515, %v533
        %s540 = scalar_lea.vmem %s2, 1
        %v541 = vld [vmem:[%s540] ss:$4 sm:$0x3]
        %v543 = vlaneseq
        %v544 = vshrl.u32 %v543, 7
        %v545 = vsub.s32 0, %v544
        %v546 = vrot.slane %v541, %v545
        %v547 = vlaneseq
        %v548 = vshrl.u32 %v547, 7
        %v549 = vsub.s32 1, %v548
        %v550 = vrot.slane %v541, %v549
        %551 = vrot.lane.b32.xlu0 %v546, 112
        %v552 = vpop.permute.xlu0 %551
        %553 = vrot.lane.b32.xlu0 %v550, 112
        %v554 = vpop.permute.xlu0 %553
        %v555 = vsel %vm431, %v552, %v554
        %v559 = vmul.f32 %v537, %v552
        %v560 = vmul.f32 %v538, %v555
        %v561 = vmul.f32 %v539, %v554
        %565 = vrot.lane.b32.xlu0 %v559, 127
        %v566 = vpop.permute.xlu0 %565
        %567 = vrot.lane.b32.xlu0 %v560, 127
        %v568 = vpop.permute.xlu0 %567
        %569 = vrot.lane.b32.xlu0 %v561, 127
        %v570 = vpop.permute.xlu0 %569
        %vm571 = vcmask 1039360
        %v572 = vsel %vm571, %v566, %v568
        %v573 = vsel %vm571, %v568, %v570
        %v577 = vadd.f32 %v487, %v572
        %v578 = vadd.f32 %v488, %v573
        %v579 = vadd.f32 %v489, %v570
        %580 = vset.pattern.permute.xlu0 2
        %581 = vperm.xlu0 %580, %v406
        %v582 = vpop.permute.xlu0 %581
        %v584 = vmul.f32 %v403, %v582
        %v585 = vmul.f32 %v404, %v582
        %v586 = vmul.f32 %v405, %v582
        %587 = vset.pattern.permute.xlu0 5
        %588 = vperm.xlu0 %587, %v406
        %v589 = vpop.permute.xlu0 %588
        %v591 = vmul.f32 %v440, %v589
        %v592 = vmul.f32 %v441, %v589
        %v593 = vmul.f32 %v442, %v589
        %597 = vrot.lane.b32.xlu0 %v591, 112
        %v598 = vpop.permute.xlu0 %597
        %599 = vrot.lane.b32.xlu0 %v592, 112
        %v600 = vpop.permute.xlu0 %599
        %601 = vrot.lane.b32.xlu0 %v593, 112
        %v602 = vpop.permute.xlu0 %601
        %v603 = vsel %vm431, %v598, %v600
        %v604 = vsel %vm431, %v600, %v602
        %v608 = vadd.f32 %v584, %v598
        %v609 = vadd.f32 %v585, %v603
        %v610 = vadd.f32 %v586, %v604
        %611 = vset.pattern.permute.xlu0 8
        %612 = vperm.xlu0 %611, %v406
        %v613 = vpop.permute.xlu0 %612
        %v615 = vmul.f32 %v440, %v613
        %v616 = vmul.f32 %v441, %v613
        %v617 = vmul.f32 %v442, %v613
        %621 = vrot.lane.b32.xlu0 %v615, 96
        %v622 = vpop.permute.xlu0 %621
        %623 = vrot.lane.b32.xlu0 %v616, 96
        %v624 = vpop.permute.xlu0 %623
        %625 = vrot.lane.b32.xlu0 %v617, 96
        %v626 = vpop.permute.xlu0 %625
        %v627 = vsel %vm459, %v622, %v624
        %v628 = vsel %vm459, %v624, %v626
        %v632 = vadd.f32 %v608, %v622
        %v633 = vadd.f32 %v609, %v627
        %v634 = vadd.f32 %v610, %v628
        %s635 = scalar_lea.vmem %s2, 2
        %v636 = vld [vmem:[%s635] ss:$4 sm:$0x3]
        %v638 = vlaneseq
        %v639 = vshrl.u32 %v638, 7
        %v640 = vsub.s32 0, %v639
        %v641 = vrot.slane %v636, %v640
        %v642 = vlaneseq
        %v643 = vshrl.u32 %v642, 7
        %v644 = vsub.s32 1, %v643
        %v645 = vrot.slane %v636, %v644
        %646 = vrot.lane.b32.xlu0 %v641, 113
        %v647 = vpop.permute.xlu0 %646
        %648 = vrot.lane.b32.xlu0 %v645, 113
        %v649 = vpop.permute.xlu0 %648
        %vm650 = vcmask 924672
        %v651 = vsel %vm650, %v647, %v649
        %v655 = vmul.f32 %v632, %v647
        %v656 = vmul.f32 %v633, %v651
        %v657 = vmul.f32 %v634, %v649
        %661 = vrot.lane.b32.xlu0 %v655, 126
        %v662 = vpop.permute.xlu0 %661
        %663 = vrot.lane.b32.xlu0 %v656, 126
        %v664 = vpop.permute.xlu0 %663
        %665 = vrot.lane.b32.xlu0 %v657, 126
        %v666 = vpop.permute.xlu0 %665
        %vm667 = vcmask 1031168
        %v668 = vsel %vm667, %v662, %v664
        %v669 = vsel %vm667, %v664, %v666
        %v673 = vadd.f32 %v577, %v668
        %v674 = vadd.f32 %v578, %v669
        %v675 = vadd.f32 %v579, %v666
        %v676 = vld [vmem:[%s3] sm:$0xff]
        %v677 = vld [vmem:[%s4] sm:$0xff]
        %681 = vrot.lane.b32.xlu0 %v673, 17
        %v682 = vpop.permute.xlu0 %681
        %683 = vrot.lane.b32.xlu0 %v674, 17
        %v684 = vpop.permute.xlu0 %683
        %685 = vrot.lane.b32.xlu0 %v675, 17
        %v686 = vpop.permute.xlu0 %685
        %vm687 = vcmask 138240
        %v688 = vsel %vm687, %v682, %v684
        %v689 = vsel %vm687, %v684, %v686
        %v692 = vadd.f32 %v688, %v689
        %693 = vadd.xlane.f32.xlu0 %v692
        %v694 = vpop.xlane.xlu0 %693
        %v695 = vrot.slane %v694, 4
        %v696 = vadd.f32 %v694, %v695
        %v697 = vrot.slane %v696, 2
        %v698 = vadd.f32 %v696, %v697
        %v699 = vrot.slane %v698, 1
        %v700 = vadd.f32 %v698, %v699
        %v701 = vmul.f32 %v673, %v673
        %v702 = vmul.f32 %v674, %v674
        %v703 = vmul.f32 %v675, %v675
        %707 = vrot.lane.b32.xlu0 %v701, 17
        %v708 = vpop.permute.xlu0 %707
        %709 = vrot.lane.b32.xlu0 %v702, 17
        %v710 = vpop.permute.xlu0 %709
        %711 = vrot.lane.b32.xlu0 %v703, 17
        %v712 = vpop.permute.xlu0 %711
        %v713 = vsel %vm687, %v708, %v710
        %v714 = vsel %vm687, %v710, %v712
        %v717 = vadd.f32 %v713, %v714
        %718 = vadd.xlane.f32.xlu0 %v717
        %v719 = vpop.xlane.xlu0 %718
        %v720 = vrot.slane %v719, 4
        %v721 = vadd.f32 %v719, %v720
        %v722 = vrot.slane %v721, 2
        %v723 = vadd.f32 %v721, %v722
        %v724 = vrot.slane %v723, 1
        %v725 = vadd.f32 %v723, %v724
        %v726 = vmul.f32 %v700, 0.00048828125
        %v727 = vmul.f32 %v725, 0.00048828125
        %v728 = vmul.f32 %v726, %v726
        %v729 = vsub.f32 %v727, %v728
        %v730 = vmax.f32 %v729, 0.0
        %v731 = vadd.f32 %v730, 1e-05
        %v732 = vrsqrt.pop %v731
        %v733 = vmul.f32 %v732, %v676
        %v734 = vmul.f32 %v726, %v732
        %v735 = vmul.f32 %v734, %v676
        %v736 = vsub.f32 %v677, %v735
        %738 = vset.pattern.permute.xlu0 0
        %739 = vperm.xlu0 %738, %v733
        %v740 = vpop.permute.xlu0 %739
        %v742 = vmul.f32 %v673, %v740
        %v743 = vmul.f32 %v674, %v740
        %v744 = vmul.f32 %v675, %v740
        %746 = vset.pattern.permute.xlu0 0
        %747 = vperm.xlu0 %746, %v736
        %v748 = vpop.permute.xlu0 %747
        %v750 = vadd.f32 %v742, %v748
        %v751 = vadd.f32 %v743, %v748
        %v752 = vadd.f32 %v744, %v748
        %v753 = vsub.f32 0.0, %v750
        %v754 = vsub.f32 0.0, %v751
        %v755 = vsub.f32 0.0, %v752
        %v756 = vmul.f32 %v753, 1.442695
        %v757 = vpow.pop %v756
        %v758 = vmul.f32 %v754, 1.442695
        %v759 = vpow.pop %v758
        %v760 = vmul.f32 %v755, 1.442695
        %v761 = vpow.pop %v760
        %v762 = vadd.f32 %v757, 1.0
        %v763 = vadd.f32 %v759, 1.0
        %v764 = vadd.f32 %v761, 1.0
        %v765 = vrcp.pop %v762
        %v766 = vrcp.pop %v763
        %v767 = vrcp.pop %v764
        %v768 = vmul.f32 %v750, %v765
        %v769 = vmul.f32 %v751, %v766
        %v770 = vmul.f32 %v752, %v767
        %v771 = vpack.c.bf16 %v768, %v768
        %v772 = vpack.c.bf16 %v769, %v769
        %v773 = vpack.c.bf16 %v770, %v770
        %v777 = vunpack.c.l.b16 %v771
        %v778 = vunpack.c.l.b16 %v772
        %v779 = vunpack.c.l.b16 %v773
        %v780 = vpack.c.b16 %v778, %v777
        %v781 = vpack.c.b16 %v779, %v779
        %782 = vrot.lane.b32.xlu0 %v780, 17
        %v783 = vpop.permute.xlu0 %782
        %784 = vrot.lane.b32.xlu0 %v781, 17
        %v785 = vpop.permute.xlu0 %784
        %v786 = vrot.slane %v783, 4
        %v787 = vrot.slane %v785, 4
        %vm788 = vcmask 1043456
        %v789 = vsel %vm788, %v786, %v787
        %vm790 = vcmask 138240
        %v791 = vsel %vm790, %v783, %v789
        %793 = vst [vmem:[#allocation3] sm:$0xff] %v791
        %v794 = vld [vmem:[%s5] sm:$0xf]
        %v795 = vld [vmem:[%s5 + $0x4] sm:$0xf]
        %v796 = vld [vmem:[%s5 + $0x8] sm:$0xf]
        %v797 = vld [vmem:[%s5 + $0xc] sm:$0xf]
        %v798 = vld [vmem:[#allocation3] sm:$0xff]
        %v803 = vunpack.c.l.b16 %v794
        %v804 = vunpack.c.l.b16 %v795
        %v805 = vunpack.c.l.b16 %v796
        %v806 = vunpack.c.l.b16 %v797
        %v807 = vpack.c.b16 %v804, %v803
        %v808 = vpack.c.b16 %v806, %v805
        %v810 = vunpack.c.l.b16 %v798
        %v811 = vunpack.c.h.b16 %v798
        %v812 = vpack.c.b16 %v810, %v810
        %v813 = vpack.c.b16 %v811, %v811
        %vm814 = vcmask 64512
        %v816 = vsel %vm814, %v807, 0
        %v819 = vsel %vm814, %v808, 0
        %vm821 = vcmask 1043456
        %v823 = vsel %vm821, %v812, 0
        %v826 = vsel %vm821, %v813, 0
        %828 = vmatprep.subr.bf16.mxu0 %v826
        %829 = vmatpush1.bf16.msra.mxu0 %v823
        %830 = vmatprep.subr.bf16.mxu0 0
        %831 = vmatpush1.bf16.msra.mxu0 0
        %832 = vmatprep.subr.bf16.mxu0 0
        %833 = vmatpush1.bf16.msra.mxu0 0
        %834 = vmatprep.subr.bf16.mxu0 0
        %835 = vmatpush1.bf16.msra.mxu0 0
        %836 = vmatprep.subr.bf16.mxu0 0
        %837 = vmatpush1.bf16.msra.mxu0 0
        %838 = vmatprep.subr.bf16.mxu0 0
        %839 = vmatpush1.bf16.msra.mxu0 0
        %840 = vmatprep.subr.bf16.mxu0 0
        %841 = vmatpush1.bf16.msra.mxu0 0
        %842 = vmatprep.subr.bf16.mxu0 0
        %843 = vmatpush1.bf16.msra.mxu0 0
        %844 = vmatprep.subr.bf16.mxu0 0
        %845 = vmatpush1.bf16.msra.mxu0 0
        %846 = vmatprep.subr.bf16.mxu0 0
        %847 = vmatpush1.bf16.msra.mxu0 0
        %848 = vmatprep.subr.bf16.mxu0 0
        %849 = vmatpush1.bf16.msra.mxu0 0
        %850 = vmatprep.subr.bf16.mxu0 0
        %851 = vmatpush1.bf16.msra.mxu0 0
        %852 = vmatprep.subr.bf16.mxu0 0
        %853 = vmatpush1.bf16.msra.mxu0 0
        %854 = vmatprep.subr.bf16.mxu0 0
        %855 = vmatpush1.bf16.msra.mxu0 0
        %856 = vmatprep.subr.bf16.mxu0 0
        %857 = vmatpush1.bf16.msra.mxu0 0
        %858 = vmatprep.subr.bf16.mxu0 0
        %859 = vmatpush1.bf16.msra.mxu0 0
        %860 = vmatprep.mubr.bf16.mxu0 0
        %861 = vmatmul.mubr.bf16.gmra.mrb[0].mxu0 %v816
        %v862 = vpop.f32.mrb[0].mxu0
        %v863 = vadd.f32 0.0, %v862
        %v864 = vpop.f32.mrb[0].mxu0
        %v865 = vadd.f32 0.0, %v864
        %v866 = vpop.f32.mrb[0].mxu0
        %v867 = vadd.f32 0.0, %v866
        %v868 = vpop.f32.mrb[0].mxu0
        %v869 = vadd.f32 0.0, %v868
        %870 = vmatprep.mubr.bf16.mxu0 0
        %871 = vmatmul.mubr.bf16.gmra.mrb[0].mxu0 %v819
        %v872 = vpop.f32.mrb[0].mxu0
        %v873 = vadd.f32 0.0, %v872
        %v874 = vpop.f32.mrb[0].mxu0
        %v875 = vadd.f32 0.0, %v874
        %v876 = vpop.f32.mrb[0].mxu0
        %v877 = vadd.f32 0.0, %v876
        %v878 = vpop.f32.mrb[0].mxu0
        %v879 = vadd.f32 0.0, %v878
        %880 = vdwg.mxu0
        %v881 = vld [vmem:[%s6] sm:$0xff]
        %v882 = vld [vmem:[%s6 + $0x8] sm:$0xff]
        %v883 = vld [vmem:[%s6 + $0x10] sm:$0xff]
        %v884 = vld [vmem:[%s6 + $0x18] sm:$0xff]
        %v885 = vld [vmem:[%s7] sm:$0xff]
        %v886 = vld [vmem:[%s7 + $0x8] sm:$0xff]
        %v887 = vld [vmem:[%s7 + $0x10] sm:$0xff]
        %v888 = vld [vmem:[%s7 + $0x18] sm:$0xff]
        %v889 = vadd.f32 %v863, %v865
        %890 = vadd.xlane.f32.xlu0 %v889
        %v891 = vpop.xlane.xlu0 %890
        %v892 = vadd.f32 %v867, %v869
        %893 = vadd.xlane.f32.xlu0 %v892
        %v894 = vpop.xlane.xlu0 %893
        %v895 = vadd.f32 %v873, %v875
        %896 = vadd.xlane.f32.xlu0 %v895
        %v897 = vpop.xlane.xlu0 %896
        %v898 = vadd.f32 %v877, %v879
        %899 = vadd.xlane.f32.xlu0 %v898
        %v900 = vpop.xlane.xlu0 %899
        %v901 = vrot.slane %v891, 4
        %v902 = vadd.f32 %v891, %v901
        %v903 = vrot.slane %v902, 2
        %v904 = vadd.f32 %v902, %v903
        %v905 = vrot.slane %v904, 1
        %v906 = vadd.f32 %v904, %v905
        %v907 = vrot.slane %v894, 4
        %v908 = vadd.f32 %v894, %v907
        %v909 = vrot.slane %v908, 2
        %v910 = vadd.f32 %v908, %v909
        %v911 = vrot.slane %v910, 1
        %v912 = vadd.f32 %v910, %v911
        %v913 = vrot.slane %v897, 4
        %v914 = vadd.f32 %v897, %v913
        %v915 = vrot.slane %v914, 2
        %v916 = vadd.f32 %v914, %v915
        %v917 = vrot.slane %v916, 1
        %v918 = vadd.f32 %v916, %v917
        %v919 = vrot.slane %v900, 4
        %v920 = vadd.f32 %v900, %v919
        %v921 = vrot.slane %v920, 2
        %v922 = vadd.f32 %v920, %v921
        %v923 = vrot.slane %v922, 1
        %v924 = vadd.f32 %v922, %v923
        %v925 = vmul.f32 %v863, %v863
        %v926 = vmul.f32 %v865, %v865
        %v927 = vmul.f32 %v867, %v867
        %v928 = vmul.f32 %v869, %v869
        %v929 = vmul.f32 %v873, %v873
        %v930 = vmul.f32 %v875, %v875
        %v931 = vmul.f32 %v877, %v877
        %v932 = vmul.f32 %v879, %v879
        %v933 = vadd.f32 %v925, %v926
        %934 = vadd.xlane.f32.xlu0 %v933
        %v935 = vpop.xlane.xlu0 %934
        %v936 = vadd.f32 %v927, %v928
        %937 = vadd.xlane.f32.xlu0 %v936
        %v938 = vpop.xlane.xlu0 %937
        %v939 = vadd.f32 %v929, %v930
        %940 = vadd.xlane.f32.xlu0 %v939
        %v941 = vpop.xlane.xlu0 %940
        %v942 = vadd.f32 %v931, %v932
        %943 = vadd.xlane.f32.xlu0 %v942
        %v944 = vpop.xlane.xlu0 %943
        %v945 = vrot.slane %v935, 4
        %v946 = vadd.f32 %v935, %v945
        %v947 = vrot.slane %v946, 2
        %v948 = vadd.f32 %v946, %v947
        %v949 = vrot.slane %v948, 1
        %v950 = vadd.f32 %v948, %v949
        %v951 = vrot.slane %v938, 4
        %v952 = vadd.f32 %v938, %v951
        %v953 = vrot.slane %v952, 2
        %v954 = vadd.f32 %v952, %v953
        %v955 = vrot.slane %v954, 1
        %v956 = vadd.f32 %v954, %v955
        %v957 = vrot.slane %v941, 4
        %v958 = vadd.f32 %v941, %v957
        %v959 = vrot.slane %v958, 2
        %v960 = vadd.f32 %v958, %v959
        %v961 = vrot.slane %v960, 1
        %v962 = vadd.f32 %v960, %v961
        %v963 = vrot.slane %v944, 4
        %v964 = vadd.f32 %v944, %v963
        %v965 = vrot.slane %v964, 2
        %v966 = vadd.f32 %v964, %v965
        %v967 = vrot.slane %v966, 1
        %v968 = vadd.f32 %v966, %v967
        %v969 = vmul.f32 %v906, 0.00048828125
        %v970 = vmul.f32 %v912, 0.00048828125
        %v971 = vmul.f32 %v918, 0.00048828125
        %v972 = vmul.f32 %v924, 0.00048828125
        %v973 = vmul.f32 %v950, 0.00048828125
        %v974 = vmul.f32 %v956, 0.00048828125
        %v975 = vmul.f32 %v962, 0.00048828125
        %v976 = vmul.f32 %v968, 0.00048828125
        %v977 = vmul.f32 %v969, %v969
        %v978 = vmul.f32 %v970, %v970
        %v979 = vmul.f32 %v971, %v971
        %v980 = vmul.f32 %v972, %v972
        %v981 = vsub.f32 %v973, %v977
        %v982 = vsub.f32 %v974, %v978
        %v983 = vsub.f32 %v975, %v979
        %v984 = vsub.f32 %v976, %v980
        %v985 = vmax.f32 %v981, 0.0
        %v986 = vmax.f32 %v982, 0.0
        %v987 = vmax.f32 %v983, 0.0
        %v988 = vmax.f32 %v984, 0.0
        %v989 = vadd.f32 %v985, 1e-05
        %v990 = vadd.f32 %v986, 1e-05
        %v991 = vadd.f32 %v987, 1e-05
        %v992 = vadd.f32 %v988, 1e-05
        %v993 = vrsqrt.pop %v989
        %v994 = vrsqrt.pop %v990
        %v995 = vrsqrt.pop %v991
        %v996 = vrsqrt.pop %v992
        %v997 = vmul.f32 %v993, %v881
        %v998 = vmul.f32 %v994, %v882
        %v999 = vmul.f32 %v995, %v883
        %v1000 = vmul.f32 %v996, %v884
        %v1001 = vmul.f32 %v969, %v993
        %v1002 = vmul.f32 %v970, %v994
        %v1003 = vmul.f32 %v971, %v995
        %v1004 = vmul.f32 %v972, %v996
        %v1005 = vmul.f32 %v1001, %v881
        %v1006 = vmul.f32 %v1002, %v882
        %v1007 = vmul.f32 %v1003, %v883
        %v1008 = vmul.f32 %v1004, %v884
        %v1009 = vsub.f32 %v885, %v1005
        %v1010 = vsub.f32 %v886, %v1006
        %v1011 = vsub.f32 %v887, %v1007
        %v1012 = vsub.f32 %v888, %v1008
        %1014 = vset.pattern.permute.xlu0 0
        %1015 = vperm.xlu0 %1014, %v997
        %v1016 = vpop.permute.xlu0 %1015
        %1019 = vset.pattern.permute.xlu0 0
        %1020 = vperm.xlu0 %1019, %v998
        %v1021 = vpop.permute.xlu0 %1020
        %1024 = vset.pattern.permute.xlu0 0
        %1025 = vperm.xlu0 %1024, %v999
        %v1026 = vpop.permute.xlu0 %1025
        %1029 = vset.pattern.permute.xlu0 0
        %1030 = vperm.xlu0 %1029, %v1000
        %v1031 = vpop.permute.xlu0 %1030
        %v1033 = vmul.f32 %v863, %v1016
        %v1034 = vmul.f32 %v865, %v1016
        %v1035 = vmul.f32 %v867, %v1021
        %v1036 = vmul.f32 %v869, %v1021
        %v1037 = vmul.f32 %v873, %v1026
        %v1038 = vmul.f32 %v875, %v1026
        %v1039 = vmul.f32 %v877, %v1031
        %v1040 = vmul.f32 %v879, %v1031
        %1042 = vset.pattern.permute.xlu0 0
        %1043 = vperm.xlu0 %1042, %v1009
        %v1044 = vpop.permute.xlu0 %1043
        %1047 = vset.pattern.permute.xlu0 0
        %1048 = vperm.xlu0 %1047, %v1010
        %v1049 = vpop.permute.xlu0 %1048
        %1052 = vset.pattern.permute.xlu0 0
        %1053 = vperm.xlu0 %1052, %v1011
        %v1054 = vpop.permute.xlu0 %1053
        %1057 = vset.pattern.permute.xlu0 0
        %1058 = vperm.xlu0 %1057, %v1012
        %v1059 = vpop.permute.xlu0 %1058
        %v1061 = vadd.f32 %v1033, %v1044
        %v1062 = vadd.f32 %v1034, %v1044
        %v1063 = vadd.f32 %v1035, %v1049
        %v1064 = vadd.f32 %v1036, %v1049
        %v1065 = vadd.f32 %v1037, %v1054
        %v1066 = vadd.f32 %v1038, %v1054
        %v1067 = vadd.f32 %v1039, %v1059
        %v1068 = vadd.f32 %v1040, %v1059
        %v1069 = vsub.f32 0.0, %v1061
        %v1070 = vsub.f32 0.0, %v1062
        %v1071 = vsub.f32 0.0, %v1063
        %v1072 = vsub.f32 0.0, %v1064
        %v1073 = vsub.f32 0.0, %v1065
        %v1074 = vsub.f32 0.0, %v1066
        %v1075 = vsub.f32 0.0, %v1067
        %v1076 = vsub.f32 0.0, %v1068
        %v1077 = vmul.f32 %v1069, 1.442695
        %v1078 = vpow.pop %v1077
        %v1079 = vmul.f32 %v1070, 1.442695
        %v1080 = vpow.pop %v1079
        %v1081 = vmul.f32 %v1071, 1.442695
        %v1082 = vpow.pop %v1081
        %v1083 = vmul.f32 %v1072, 1.442695
        %v1084 = vpow.pop %v1083
        %v1085 = vmul.f32 %v1073, 1.442695
        %v1086 = vpow.pop %v1085
        %v1087 = vmul.f32 %v1074, 1.442695
        %v1088 = vpow.pop %v1087
        %v1089 = vmul.f32 %v1075, 1.442695
        %v1090 = vpow.pop %v1089
        %v1091 = vmul.f32 %v1076, 1.442695
        %v1092 = vpow.pop %v1091
        %v1093 = vadd.f32 %v1078, 1.0
        %v1094 = vadd.f32 %v1080, 1.0
        %v1095 = vadd.f32 %v1082, 1.0
        %v1096 = vadd.f32 %v1084, 1.0
        %v1097 = vadd.f32 %v1086, 1.0
        %v1098 = vadd.f32 %v1088, 1.0
        %v1099 = vadd.f32 %v1090, 1.0
        %v1100 = vadd.f32 %v1092, 1.0
        %v1101 = vrcp.pop %v1093
        %v1102 = vrcp.pop %v1094
        %v1103 = vrcp.pop %v1095
        %v1104 = vrcp.pop %v1096
        %v1105 = vrcp.pop %v1097
        %v1106 = vrcp.pop %v1098
        %v1107 = vrcp.pop %v1099
        %v1108 = vrcp.pop %v1100
        %v1109 = vmul.f32 %v1061, %v1101
        %v1110 = vmul.f32 %v1062, %v1102
        %v1111 = vmul.f32 %v1063, %v1103
        %v1112 = vmul.f32 %v1064, %v1104
        %v1113 = vmul.f32 %v1065, %v1105
        %v1114 = vmul.f32 %v1066, %v1106
        %v1115 = vmul.f32 %v1067, %v1107
        %v1116 = vmul.f32 %v1068, %v1108
        %v1117 = vpack.c.bf16 %v1111, %v1109
        %v1118 = vpack.c.bf16 %v1112, %v1110
        %v1119 = vpack.c.bf16 %v1115, %v1113
        %v1120 = vpack.c.bf16 %v1116, %v1114
        %1121 = vst [vmem:[#allocation4] sm:$0xff] %v1117
        %1122 = vst [vmem:[#allocation4 + $0x8] sm:$0xff] %v1118
        %1123 = vst [vmem:[#allocation4 + $0x10] sm:$0xff] %v1119
        %1124 = vst [vmem:[#allocation4 + $0x18] sm:$0xff] %v1120
        %v1125 = vld [vmem:[%s8] sm:$0xf]
        %v1126 = vld [vmem:[%s8 + $0x4] sm:$0xf]
        %v1127 = vld [vmem:[#allocation4] sm:$0xff]
        %v1128 = vld [vmem:[#allocation4 + $0x8] sm:$0xff]
        %v1129 = vld [vmem:[#allocation4 + $0x10] sm:$0xff]
        %v1130 = vld [vmem:[#allocation4 + $0x18] sm:$0xff]
        %v1131 = vld [vmem:[%s9] sm:$0xf]
        %v1132 = vld [vmem:[%s9 + $0x4] sm:$0xf]
        %v1133 = vld [vmem:[#allocation5] sm:$0xff]
        %v1136 = vunpack.c.l.b16 %v1131
        %v1137 = vunpack.c.l.b16 %v1132
        %v1138 = vpack.c.b16 %v1137, %v1136
        %v1140 = vunpack.c.l.b16 %v1133
        %v1141 = vunpack.c.h.b16 %v1133
        %v1142 = vpack.c.b16 %v1140, %v1140
        %v1143 = vpack.c.b16 %v1141, %v1141
        %v1145 = vsel %vm814, %v1138, 0
        %v1148 = vsel %vm821, %v1142, 0
        %v1151 = vsel %vm821, %v1143, 0
        %1153 = vmatprep.subr.bf16.mxu0 %v1151
        %1154 = vmatpush1.bf16.msra.mxu0 %v1148
        %1155 = vmatprep.subr.bf16.mxu0 0
        %1156 = vmatpush1.bf16.msra.mxu0 0
        %1157 = vmatprep.subr.bf16.mxu0 0
        %1158 = vmatpush1.bf16.msra.mxu0 0
        %1159 = vmatprep.subr.bf16.mxu0 0
        %1160 = vmatpush1.bf16.msra.mxu0 0
        %1161 = vmatprep.subr.bf16.mxu0 0
        %1162 = vmatpush1.bf16.msra.mxu0 0
        %1163 = vmatprep.subr.bf16.mxu0 0
        %1164 = vmatpush1.bf16.msra.mxu0 0
        %1165 = vmatprep.subr.bf16.mxu0 0
        %1166 = vmatpush1.bf16.msra.mxu0 0
        %1167 = vmatprep.subr.bf16.mxu0 0
        %1168 = vmatpush1.bf16.msra.mxu0 0
        %1169 = vmatprep.subr.bf16.mxu0 0
        %1170 = vmatpush1.bf16.msra.mxu0 0
        %1171 = vmatprep.subr.bf16.mxu0 0
        %1172 = vmatpush1.bf16.msra.mxu0 0
        %1173 = vmatprep.subr.bf16.mxu0 0
        %1174 = vmatpush1.bf16.msra.mxu0 0
        %1175 = vmatprep.subr.bf16.mxu0 0
        %1176 = vmatpush1.bf16.msra.mxu0 0
        %1177 = vmatprep.subr.bf16.mxu0 0
        %1178 = vmatpush1.bf16.msra.mxu0 0
        %1179 = vmatprep.subr.bf16.mxu0 0
        %1180 = vmatpush1.bf16.msra.mxu0 0
        %1181 = vmatprep.subr.bf16.mxu0 0
        %1182 = vmatpush1.bf16.msra.mxu0 0
        %1183 = vmatprep.subr.bf16.mxu0 0
        %1184 = vmatpush1.bf16.msra.mxu0 0
        %1185 = vmatprep.mubr.bf16.mxu0 0
        %1186 = vmatmul.mubr.bf16.gmra.mrb[0].mxu0 %v1145
        %v1187 = vpop.f32.mrb[0].mxu0
        %v1188 = vadd.f32 0.0, %v1187
        %v1189 = vpop.f32.mrb[0].mxu0
        %v1190 = vadd.f32 0.0, %v1189
        %v1191 = vpop.f32.mrb[0].mxu0
        %v1192 = vadd.f32 0.0, %v1191
        %v1193 = vpop.f32.mrb[0].mxu0
        %v1194 = vadd.f32 0.0, %v1193
        %1195 = vdwg.mxu0
        %v1198 = vunpack.c.l.b16 %v1125
        %v1199 = vunpack.c.l.b16 %v1126
        %v1200 = vpack.c.b16 %v1199, %v1198
        %vm1201 = vcmask 261120
        %v1203 = vsel %vm1201, %v1200, 0
        %1205 = vmatprep.subr.bf16.mxu0 %v1128
        %1206 = vmatpush1.bf16.msra.mxu0 %v1127
        %1207 = vmatprep.subr.bf16.mxu0 %v1130
        %1208 = vmatpush1.bf16.msra.mxu0 %v1129
        %1209 = vmatprep.subr.bf16.mxu0 0
        %1210 = vmatpush1.bf16.msra.mxu0 0
        %1211 = vmatprep.subr.bf16.mxu0 0
        %1212 = vmatpush1.bf16.msra.mxu0 0
        %1213 = vmatprep.subr.bf16.mxu0 0
        %1214 = vmatpush1.bf16.msra.mxu0 0
        %1215 = vmatprep.subr.bf16.mxu0 0
        %1216 = vmatpush1.bf16.msra.mxu0 0
        %1217 = vmatprep.subr.bf16.mxu0 0
        %1218 = vmatpush1.bf16.msra.mxu0 0
        %1219 = vmatprep.subr.bf16.mxu0 0
        %1220 = vmatpush1.bf16.msra.mxu0 0
        %1221 = vmatprep.subr.bf16.mxu0 0
        %1222 = vmatpush1.bf16.msra.mxu0 0
        %1223 = vmatprep.subr.bf16.mxu0 0
        %1224 = vmatpush1.bf16.msra.mxu0 0
        %1225 = vmatprep.subr.bf16.mxu0 0
        %1226 = vmatpush1.bf16.msra.mxu0 0
        %1227 = vmatprep.subr.bf16.mxu0 0
        %1228 = vmatpush1.bf16.msra.mxu0 0
        %1229 = vmatprep.subr.bf16.mxu0 0
        %1230 = vmatpush1.bf16.msra.mxu0 0
        %1231 = vmatprep.subr.bf16.mxu0 0
        %1232 = vmatpush1.bf16.msra.mxu0 0
        %1233 = vmatprep.subr.bf16.mxu0 0
        %1234 = vmatpush1.bf16.msra.mxu0 0
        %1235 = vmatprep.subr.bf16.mxu0 0
        %1236 = vmatpush1.bf16.msra.mxu0 0
        %1237 = vmatprep.mubr.bf16.mxu0 0
        %1238 = vmatmul.mubr.bf16.gmra.mrb[0].mxu0 %v1203
        %v1239 = vpop.f32.mrb[0].mxu0
        %v1240 = vadd.f32 %v1188, %v1239
        %v1241 = vpop.f32.mrb[0].mxu0
        %v1242 = vadd.f32 %v1190, %v1241
        %v1243 = vpop.f32.mrb[0].mxu0
        %v1244 = vadd.f32 %v1192, %v1243
        %v1245 = vpop.f32.mrb[0].mxu0
        %v1246 = vadd.f32 %v1194, %v1245
        %1247 = vdwg.mxu0
        %v1248 = vld [vmem:[%s10] sm:$0xff]
        %v1249 = vld [vmem:[%s10 + $0x8] sm:$0xff]
        %1251 = vset.pattern.permute.xlu0 0
        %1252 = vperm.xlu0 %1251, %v1248
        %v1253 = vpop.permute.xlu0 %1252
        %1256 = vset.pattern.permute.xlu0 0
        %1257 = vperm.xlu0 %1256, %v1249
        %v1258 = vpop.permute.xlu0 %1257
        %v1260 = vadd.f32 %v1240, %v1253
        %v1261 = vadd.f32 %v1242, %v1253
        %v1262 = vadd.f32 %v1244, %v1258
        %v1263 = vadd.f32 %v1246, %v1258
        %1264 = vst [vmem:[%s379] sm:$0xff] %v1260
        %1265 = vst [vmem:[%s379 + $0x8] sm:$0xff] %v1261
        %1266 = vst [vmem:[%s379 + $0x10] sm:$0xff] %v1262
        %1267 = vst [vmem:[%s379 + $0x18] sm:$0xff] %v1263
        %s1268 = sand.u32 %s269, 1
        %s1269 = scalar_lea.sflag [#allocation7], %s1268
        %s1270 = sand.u32 %s269, 1
        %s1271 = smul.addr %s1270, 32
        %s1272 = scalar_lea.vmem [#allocation6], %s1271
        // Predicated region
        $region65: #{tpu_custom_call.1} parent=63 // pred_check
          %p1273 = pneg %p279
        $region66: #{tpu_custom_call.1} parent=63 // pred_check_branch
          %1275 = sbr.rel (%p1273) target = $region68
        $region67: #{tpu_custom_call.1} parent=63 // pred_region
          %s1277 = ssub.s32 512, 512
          %1278 = vsyncadd %s1269, %s1277
          %s1279 = smul.addr %s25, 4
          %s1280 = smul.addr %s1279, 128
          %s1281 = scalar_lea.hbm %s11, %s1280
          %s1282 = sshll.u32 %s1272, 4
          %s1283 = int_to_ptr.vmem [resolvable:$true] %s1282
          %1288 = dma.vmem_to_hbm [thread:$0]  %s1283, 512, %s1281, %s1269, 256, 256, 16
        $region68: #{tpu_custom_call.1} parent=63 // pred_fallthru
          _
      $region64: #{tpu_custom_call.1} parent=5 // pred_fallthru
        _
      %p1289 = scmp.le.s32.totalorder 2, %s20
      // Predicated region
      $region69: #{tpu_custom_call.1} parent=5 // pred_check
        %p1290 = pneg %p1289
      $region70: #{tpu_custom_call.1} parent=5 // pred_check_branch
        %1292 = sbr.rel (%p1290) target = $region72
      $region71: #{tpu_custom_call.1} parent=5 // pred_region
        %s1293 = ssub.s32 %s20, 2
        // Predicated region
        $region73: #{tpu_custom_call.1} parent=71 // pred_check
          %p1294 = pneg %p285
        $region74: #{tpu_custom_call.1} parent=71 // pred_check_branch
          %1296 = sbr.rel (%p1294) target = $region76
        $region75: #{tpu_custom_call.1} parent=71 // pred_region
          %s1297 = sand.u32 %s270, 1
          %s1298 = scalar_lea.sflag [#allocation7], %s1297
          %s1299 = sand.u32 %s270, 1
          %s1300 = smul.addr %s1299, 32
          %s1301 = scalar_lea.vmem [#allocation6], %s1300
          %1302 = dma.done %s1298, 512
        $region76: #{tpu_custom_call.1} parent=71 // pred_fallthru
          _
      $region72: #{tpu_custom_call.1} parent=5 // pred_fallthru
        _
    $region6: #{tpu_custom_call.1} parent=1 // loop_footer
      %s24 = sadd.s32 1, %s20
    $region7: #{tpu_custom_call.1} parent=1 // loop_footer_branch
      %19 = sbr.rel target = $region3
    $region8: #{tpu_custom_call.1} parent=1 // loop_exit
      _
    %1303 = vsyncpa [#allocation7], 1
    %s1304 = scalar_lea.sflag [#allocation7], 1
    %1305 = vsyncpa %s1304, 1

</llo_original>
